<compile_context>
chip_gen: v6e
topology: v6e:2x2x1
jax: 0.10.0
libtpu: 0.0.40
codegen_flags: <defaults>
</compile_context>

<pallas_src>
import math

import numpy as np
import jax
import jax.numpy as jnp
from jax.experimental import pallas as pl
from jax.experimental.pallas import tpu as pltpu

K = 4   # kernel size
S = 2   # stride
P = 1   # padding


# --------------------- constant operator construction ---------------------- #
def _make_row_gather(h_in):
    """R[(ky*Ho + oy), iy] = 1  iff  oy == S*iy + ky - P   (per sample)."""
    ho = S * h_in
    r = np.zeros((K * ho, h_in), np.float32)
    for ky in range(K):
        for iy in range(h_in):
            oy = S * iy + ky - P
            if 0 <= oy < ho:
                r[ky * ho + oy, iy] = 1.0
    return jnp.asarray(r)


def _make_tap_weights(w_pt, w_in):
    """Stacked banded weights: rows (ky, ix, ci), cols (ox, co).

    TapW[ky][(ix, ci), (ox, co)] = w_pt[ci, co, ky, kx] with kx = ox - S*ix + P
    when 0 <= kx < K, else 0.
    """
    cin, cout = w_pt.shape[0], w_pt.shape[1]
    wo = S * w_in
    ox = np.arange(wo)[None, :]
    ix = np.arange(w_in)[:, None]
    kx = ox - S * ix + P                                   # (W, Wo)
    valid = jnp.asarray(((kx >= 0) & (kx < K)).astype(np.float32))
    kx_c = np.clip(kx, 0, K - 1)
    w_g = w_pt[:, :, :, kx_c]                              # (Cin, Cout, K, W, Wo)
    w_g = w_g * valid[None, None, None, :, :]
    b = jnp.transpose(w_g, (2, 3, 0, 4, 1))                # (K, W, Cin, Wo, Cout)
    return b.reshape(K * w_in * cin, wo * cout)


def pack_decoder_params(params, h0, w0):
    """Per-layer (row_gather_bf16, tap_weights_bf16, bias_row_f32) constants."""
    layers = []
    h, w = h0, w0
    n_layers = 3
    for i in (1, 2, 3):
        w_pt, b = params[f"w{i}"], params[f"b{i}"]
        cout = w_pt.shape[1]
        if i == n_layers:
            # Pad final Cout so Wo * Cout_pad is a multiple of 128 (lane-dense
            # output stores).  Pad channels have zero weights and zero bias.
            wo = S * w
            mult = 128 // math.gcd(wo, 128)
            cout_pad = ((cout + mult - 1) // mult) * mult
            if cout_pad > cout:
                w_pt = jnp.pad(w_pt,
                               ((0, 0), (0, cout_pad - cout), (0, 0), (0, 0)))
                b = jnp.pad(b, (0, cout_pad - cout))
            cout = cout_pad
        layers.append((
            _make_row_gather(h).astype(jnp.bfloat16),
            _make_tap_weights(w_pt, w).astype(jnp.bfloat16),
            jnp.tile(b, S * w).reshape(1, S * w * cout).astype(jnp.float32),
        ))
        h, w = S * h, S * w
    return layers


# ----------------------------- Pallas kernel ------------------------------- #
def _decoder_kernel(x_ref,
                    r1_ref, t1_ref, b1_ref,
                    r2_ref, t2_ref, b2_ref,
                    r3_ref, t3_ref, b3_ref,
                    o_ref):
    def deconv(h, r_ref, t_ref, b_ref, relu):
        wc = h.shape[1]                 # W * Cin of this layer
        ho = r_ref.shape[0] // K        # output rows per sample
        # All K row-taps (stride-2 row scatter) in one bf16 matmul:
        # (K*Ho, H) @ (H, W*Cin), f32 accumulation (exact: R is 0/1).
        g = jnp.dot(r_ref[...], h.astype(jnp.bfloat16),
                    preferred_element_type=jnp.float32)
        # Column scatter + channel mix, one (Ho, W*Cin)@(W*Cin, Wo*Cout) per
        # row-tap; bias seeds the f32 accumulator, ReLU fused in the epilogue.
        y = b_ref[...]
        for ky in range(K):
            gk = g[ky * ho:(ky + 1) * ho, :].astype(jnp.bfloat16)
            y = y + jnp.dot(gk, t_ref[ky * wc:(ky + 1) * wc, :],
                            preferred_element_type=jnp.float32)
        if relu:
            y = jnp.maximum(y, 0.0)
        return y

    bs = x_ref.shape[0]                 # samples per grid step (static)
    for s in range(bs):
        h = x_ref[s]                                        # (H0, W0*C0) bf16
        h = deconv(h, r1_ref, t1_ref, b1_ref, True)         # (2H0, 2W0*C1)
        h = deconv(h, r2_ref, t2_ref, b2_ref, True)         # (4H0, 4W0*C2)
        h = deconv(h, r3_ref, t3_ref, b3_ref, False)        # (8H0, 8W0*C3p)
        o_ref[s] = h


def _decoder_pallas(x_rep, layers):
    n, h0, wc0 = x_rep.shape
    r3, t3, _ = layers[2]
    ho3 = r3.shape[0] // K
    cols3 = t3.shape[1]

    # Grid-step batching: keep 2 parallel steps when possible (v7x: 2 TCs split
    # them), each step handles bs samples to amortize ~600-cycle step overhead
    # on single-TC v5e/v6e.
    steps = 2 if (n >= 2 and n % 2 == 0) else n
    bs = n // steps

    args = [x_rep]
    in_specs = [pl.BlockSpec((bs, h0, wc0), lambda i: (i, 0, 0))]
    for (r, t, b) in layers:
        args += [r, t, b]
        # Constant index_map -> fetched once, never re-DMA'd across steps.
        in_specs += [pl.BlockSpec(r.shape, lambda i: (0, 0)),
                     pl.BlockSpec(t.shape, lambda i: (0, 0)),
                     pl.BlockSpec(b.shape, lambda i: (0, 0))]

    return pl.pallas_call(
        _decoder_kernel,
        out_shape=jax.ShapeDtypeStruct((n, ho3, cols3), jnp.float32),
        grid=(steps,),
        in_specs=in_specs,
        out_specs=pl.BlockSpec((bs, ho3, cols3), lambda i: (i, 0, 0)),
        compiler_params=pltpu.CompilerParams(
            dimension_semantics=("parallel",)),
    )(*args)


# ----------------------------- Decoder forward ------------------------------ #
def decoder_forward(x_nchw, layers, out_channels):
    n, c0, h0, w0 = x_nchw.shape
    # NCHW -> (N, H, W*C) lane-dense row representation, bf16 for the MXU.
    x_rep = jnp.transpose(x_nchw, (0, 2, 3, 1)).reshape(n, h0, w0 * c0)
    x_rep = x_rep.astype(jnp.bfloat16)
    out = _decoder_pallas(x_rep, layers)                   # (N, Ho, Wo*Cout_pad)
    ho = out.shape[1]
    wo = (S ** 3) * w0
    cout_pad = out.shape[2] // wo
    out = out.reshape(n, ho, wo, cout_pad)[..., :out_channels]
    return jnp.transpose(out, (0, 3, 1, 2))                # NHWC -> NCHW


def init_params(key, latent_channels, output_channels):
    """Deterministic uniform init (PyTorch-style fan_in scaling)."""
    dims = [(latent_channels * 4, latent_channels * 2),
            (latent_channels * 2, latent_channels),
            (latent_channels, output_channels)]
    params = {}
    for i, (cin, cout) in enumerate(dims, start=1):
        key, kw, kb = jax.random.split(key, 3)
        scale = 1.0 / np.sqrt(cin * K * K)
        params[f"w{i}"] = jax.random.uniform(kw, (cin, cout, K, K),
                                             jnp.float32, -scale, scale)
        params[f"b{i}"] = jax.random.uniform(kb, (cout,),
                                             jnp.float32, -scale, scale)
    return params


# -------------------------- Pure-JAX reference ------------------------------ #
def ref_conv_transpose2d(x_nchw, w_pt, b):
    """Scatter-style reference for ConvTranspose2d(k=4, s=2, p=1), NCHW."""
    N, Cin, H, W = x_nchw.shape
    Cout = w_pt.shape[1]
    Ho, Wo = S * H, S * W
    out = jnp.zeros((N, Cout, S * H + K - 1, S * W + K - 1), jnp.float32)
    for ky in range(K):
        for kx in range(K):
            contrib = jnp.einsum("nchw,cd->ndhw", x_nchw, w_pt[:, :, ky, kx],
                                 precision=jax.lax.Precision.HIGHEST)
            out = out.at[:, :, ky:ky + S * H:S, kx:kx + S * W:S].add(contrib)
    return out[:, :, P:P + Ho, P:P + Wo] + b[None, :, None, None]


def ref_decoder(x, params):
    x = jax.nn.relu(ref_conv_transpose2d(x, params["w1"], params["b1"]))
    x = jax.nn.relu(ref_conv_transpose2d(x, params["w2"], params["b2"]))
    return ref_conv_transpose2d(x, params["w3"], params["b3"])


# ---------------------------------- main ------------------------------------ #
if __name__ == "__main__":
    latent_channels, output_channels = 4, 3
    key = jax.random.PRNGKey(0)
    kx, kp = jax.random.split(key)
    params = init_params(kp, latent_channels, output_channels)

    # Small input consistent with the module: (N=2, latent_channels*4=16, 4, 4)
    x = jax.random.normal(kx, (2, latent_channels * 4, 4, 4), jnp.float32)

    layers = pack_decoder_params(params, x.shape[2], x.shape[3])

    fwd = jax.jit(decoder_forward, static_argnums=2)
    out = jax.block_until_ready(fwd(x, layers, output_channels))

    assert out.shape == (2, output_channels, 32, 32), out.shape

    ref = ref_decoder(x, params)
    # bf16 operands (f32 accumulation) across a 3-layer chain -> loosened tol.
    np.testing.assert_allclose(np.asarray(out), np.asarray(ref),
                               atol=2e-2, rtol=2e-2)
    print("KERNEL_OK")
</pallas_src>

<mosaic_0001>
module attributes {stable_mosaic.version = 11 : i64} {
  func.func @_decoder_kernel(%arg0: i32, %arg1: memref<1x4x64xbf16, #tpu.memory_space<vmem>>, %arg2: memref<32x4xbf16, #tpu.memory_space<vmem>>, %arg3: memref<256x64xbf16, #tpu.memory_space<vmem>>, %arg4: memref<1x64xf32, #tpu.memory_space<vmem>>, %arg5: memref<64x8xbf16, #tpu.memory_space<vmem>>, %arg6: memref<256x64xbf16, #tpu.memory_space<vmem>>, %arg7: memref<1x64xf32, #tpu.memory_space<vmem>>, %arg8: memref<128x16xbf16, #tpu.memory_space<vmem>>, %arg9: memref<256x128xbf16, #tpu.memory_space<vmem>>, %arg10: memref<1x128xf32, #tpu.memory_space<vmem>>, %arg11: memref<1x32x128xf32, #tpu.memory_space<vmem>>) attributes {dimension_semantics = [#tpu.dimension_semantics<parallel>], iteration_bounds = array<i64: 2>, scalar_prefetch = 0 : i64, scratch_operands = 0 : i64, tpu.core_type = #tpu.core_type<tc>, window_params = [{transform_indices = @transform_0, window_bounds = array<i64: 1, 4, 64>}, {pipeline_mode = #tpu.pipeline_mode<synchronous>, transform_indices = @transform_1, window_bounds = array<i64: 32, 4>}, {pipeline_mode = #tpu.pipeline_mode<synchronous>, transform_indices = @transform_2, window_bounds = array<i64: 256, 64>}, {pipeline_mode = #tpu.pipeline_mode<synchronous>, transform_indices = @transform_3, window_bounds = array<i64: 1, 64>}, {pipeline_mode = #tpu.pipeline_mode<synchronous>, transform_indices = @transform_4, window_bounds = array<i64: 64, 8>}, {pipeline_mode = #tpu.pipeline_mode<synchronous>, transform_indices = @transform_5, window_bounds = array<i64: 256, 64>}, {pipeline_mode = #tpu.pipeline_mode<synchronous>, transform_indices = @transform_6, window_bounds = array<i64: 1, 64>}, {pipeline_mode = #tpu.pipeline_mode<synchronous>, transform_indices = @transform_7, window_bounds = array<i64: 128, 16>}, {pipeline_mode = #tpu.pipeline_mode<synchronous>, transform_indices = @transform_8, window_bounds = array<i64: 256, 128>}, {pipeline_mode = #tpu.pipeline_mode<synchronous>, transform_indices = @transform_9, window_bounds = array<i64: 1, 128>}, {transform_indices = @transform_10, window_bounds = array<i64: 1, 32, 128>}]} {
    %c0 = arith.constant 0 : index
    %c0_0 = arith.constant 0 : index
    %c0_1 = arith.constant 0 : index
    %0 = vector.load %arg1[%c0, %c0_0, %c0_1] : memref<1x4x64xbf16, #tpu.memory_space<vmem>>, vector<1x4x64xbf16>
    %1 = vector.shape_cast %0 : vector<1x4x64xbf16> to vector<4x64xbf16>
    %c0_2 = arith.constant 0 : index
    %c0_3 = arith.constant 0 : index
    %2 = vector.load %arg2[%c0_2, %c0_3] : memref<32x4xbf16, #tpu.memory_space<vmem>>, vector<32x4xbf16>
    %cst = arith.constant dense<0.000000e+00> : vector<32x64xf32>
    %3 = tpu.matmul %2, %1, %cst {dimension_numbers = #tpu.dot_dimension_numbers<[1], [0], [0], [1], [0, 0, 1, 1], [], []>} : vector<32x4xbf16>, vector<4x64xbf16>, vector<32x64xf32> -> vector<32x64xf32>
    %c0_4 = arith.constant 0 : index
    %c0_5 = arith.constant 0 : index
    %4 = vector.load %arg4[%c0_4, %c0_5] : memref<1x64xf32, #tpu.memory_space<vmem>>, vector<1x64xf32>
    %5 = vector.extract_strided_slice %3 {offsets = [0, 0], sizes = [8, 64], strides = [1, 1]} : vector<32x64xf32> to vector<8x64xf32>
    %6 = arith.truncf %5 : vector<8x64xf32> to vector<8x64xbf16>
    %c0_6 = arith.constant 0 : index
    %c0_7 = arith.constant 0 : index
    %7 = vector.load %arg3[%c0_6, %c0_7] : memref<256x64xbf16, #tpu.memory_space<vmem>>, vector<64x64xbf16>
    %cst_8 = arith.constant dense<0.000000e+00> : vector<8x64xf32>
    %8 = tpu.matmul %6, %7, %cst_8 {dimension_numbers = #tpu.dot_dimension_numbers<[1], [0], [0], [1], [0, 0, 1, 1], [], []>} : vector<8x64xbf16>, vector<64x64xbf16>, vector<8x64xf32> -> vector<8x64xf32>
    %9 = vector.broadcast %4 : vector<1x64xf32> to vector<8x64xf32>
    %10 = arith.addf %9, %8 : vector<8x64xf32>
    %11 = vector.extract_strided_slice %3 {offsets = [8, 0], sizes = [8, 64], strides = [1, 1]} : vector<32x64xf32> to vector<8x64xf32>
    %12 = arith.truncf %11 : vector<8x64xf32> to vector<8x64xbf16>
    %c64 = arith.constant 64 : index
    %c0_9 = arith.constant 0 : index
    %13 = vector.load %arg3[%c64, %c0_9] : memref<256x64xbf16, #tpu.memory_space<vmem>>, vector<64x64xbf16>
    %cst_10 = arith.constant dense<0.000000e+00> : vector<8x64xf32>
    %14 = tpu.matmul %12, %13, %cst_10 {dimension_numbers = #tpu.dot_dimension_numbers<[1], [0], [0], [1], [0, 0, 1, 1], [], []>} : vector<8x64xbf16>, vector<64x64xbf16>, vector<8x64xf32> -> vector<8x64xf32>
    %15 = arith.addf %10, %14 : vector<8x64xf32>
    %16 = vector.extract_strided_slice %3 {offsets = [16, 0], sizes = [8, 64], strides = [1, 1]} : vector<32x64xf32> to vector<8x64xf32>
    %17 = arith.truncf %16 : vector<8x64xf32> to vector<8x64xbf16>
    %c128 = arith.constant 128 : index
    %c0_11 = arith.constant 0 : index
    %18 = vector.load %arg3[%c128, %c0_11] : memref<256x64xbf16, #tpu.memory_space<vmem>>, vector<64x64xbf16>
    %cst_12 = arith.constant dense<0.000000e+00> : vector<8x64xf32>
    %19 = tpu.matmul %17, %18, %cst_12 {dimension_numbers = #tpu.dot_dimension_numbers<[1], [0], [0], [1], [0, 0, 1, 1], [], []>} : vector<8x64xbf16>, vector<64x64xbf16>, vector<8x64xf32> -> vector<8x64xf32>
    %20 = arith.addf %15, %19 : vector<8x64xf32>
    %21 = vector.extract_strided_slice %3 {offsets = [24, 0], sizes = [8, 64], strides = [1, 1]} : vector<32x64xf32> to vector<8x64xf32>
    %22 = arith.truncf %21 : vector<8x64xf32> to vector<8x64xbf16>
    %c192 = arith.constant 192 : index
    %c0_13 = arith.constant 0 : index
    %23 = vector.load %arg3[%c192, %c0_13] : memref<256x64xbf16, #tpu.memory_space<vmem>>, vector<64x64xbf16>
    %cst_14 = arith.constant dense<0.000000e+00> : vector<8x64xf32>
    %24 = tpu.matmul %22, %23, %cst_14 {dimension_numbers = #tpu.dot_dimension_numbers<[1], [0], [0], [1], [0, 0, 1, 1], [], []>} : vector<8x64xbf16>, vector<64x64xbf16>, vector<8x64xf32> -> vector<8x64xf32>
    %25 = arith.addf %20, %24 : vector<8x64xf32>
    %cst_15 = arith.constant 0.000000e+00 : f32
    %26 = vector.broadcast %cst_15 : f32 to vector<8x64xf32>
    %27 = arith.maximumf %25, %26 : vector<8x64xf32>
    %c0_16 = arith.constant 0 : index
    %c0_17 = arith.constant 0 : index
    %28 = vector.load %arg5[%c0_16, %c0_17] : memref<64x8xbf16, #tpu.memory_space<vmem>>, vector<64x8xbf16>
    %29 = arith.truncf %27 : vector<8x64xf32> to vector<8x64xbf16>
    %cst_18 = arith.constant dense<0.000000e+00> : vector<64x64xf32>
    %30 = tpu.matmul %28, %29, %cst_18 {dimension_numbers = #tpu.dot_dimension_numbers<[1], [0], [0], [1], [0, 0, 1, 1], [], []>} : vector<64x8xbf16>, vector<8x64xbf16>, vector<64x64xf32> -> vector<64x64xf32>
    %c0_19 = arith.constant 0 : index
    %c0_20 = arith.constant 0 : index
    %31 = vector.load %arg7[%c0_19, %c0_20] : memref<1x64xf32, #tpu.memory_space<vmem>>, vector<1x64xf32>
    %32 = vector.extract_strided_slice %30 {offsets = [0, 0], sizes = [16, 64], strides = [1, 1]} : vector<64x64xf32> to vector<16x64xf32>
    %33 = arith.truncf %32 : vector<16x64xf32> to vector<16x64xbf16>
    %c0_21 = arith.constant 0 : index
    %c0_22 = arith.constant 0 : index
    %34 = vector.load %arg6[%c0_21, %c0_22] : memref<256x64xbf16, #tpu.memory_space<vmem>>, vector<64x64xbf16>
    %cst_23 = arith.constant dense<0.000000e+00> : vector<16x64xf32>
    %35 = tpu.matmul %33, %34, %cst_23 {dimension_numbers = #tpu.dot_dimension_numbers<[1], [0], [0], [1], [0, 0, 1, 1], [], []>} : vector<16x64xbf16>, vector<64x64xbf16>, vector<16x64xf32> -> vector<16x64xf32>
    %36 = vector.broadcast %31 : vector<1x64xf32> to vector<16x64xf32>
    %37 = arith.addf %36, %35 : vector<16x64xf32>
    %38 = vector.extract_strided_slice %30 {offsets = [16, 0], sizes = [16, 64], strides = [1, 1]} : vector<64x64xf32> to vector<16x64xf32>
    %39 = arith.truncf %38 : vector<16x64xf32> to vector<16x64xbf16>
    %c64_24 = arith.constant 64 : index
    %c0_25 = arith.constant 0 : index
    %40 = vector.load %arg6[%c64_24, %c0_25] : memref<256x64xbf16, #tpu.memory_space<vmem>>, vector<64x64xbf16>
    %cst_26 = arith.constant dense<0.000000e+00> : vector<16x64xf32>
    %41 = tpu.matmul %39, %40, %cst_26 {dimension_numbers = #tpu.dot_dimension_numbers<[1], [0], [0], [1], [0, 0, 1, 1], [], []>} : vector<16x64xbf16>, vector<64x64xbf16>, vector<16x64xf32> -> vector<16x64xf32>
    %42 = arith.addf %37, %41 : vector<16x64xf32>
    %43 = vector.extract_strided_slice %30 {offsets = [32, 0], sizes = [16, 64], strides = [1, 1]} : vector<64x64xf32> to vector<16x64xf32>
    %44 = arith.truncf %43 : vector<16x64xf32> to vector<16x64xbf16>
    %c128_27 = arith.constant 128 : index
    %c0_28 = arith.constant 0 : index
    %45 = vector.load %arg6[%c128_27, %c0_28] : memref<256x64xbf16, #tpu.memory_space<vmem>>, vector<64x64xbf16>
    %cst_29 = arith.constant dense<0.000000e+00> : vector<16x64xf32>
    %46 = tpu.matmul %44, %45, %cst_29 {dimension_numbers = #tpu.dot_dimension_numbers<[1], [0], [0], [1], [0, 0, 1, 1], [], []>} : vector<16x64xbf16>, vector<64x64xbf16>, vector<16x64xf32> -> vector<16x64xf32>
    %47 = arith.addf %42, %46 : vector<16x64xf32>
    %48 = vector.extract_strided_slice %30 {offsets = [48, 0], sizes = [16, 64], strides = [1, 1]} : vector<64x64xf32> to vector<16x64xf32>
    %49 = arith.truncf %48 : vector<16x64xf32> to vector<16x64xbf16>
    %c192_30 = arith.constant 192 : index
    %c0_31 = arith.constant 0 : index
    %50 = vector.load %arg6[%c192_30, %c0_31] : memref<256x64xbf16, #tpu.memory_space<vmem>>, vector<64x64xbf16>
    %cst_32 = arith.constant dense<0.000000e+00> : vector<16x64xf32>
    %51 = tpu.matmul %49, %50, %cst_32 {dimension_numbers = #tpu.dot_dimension_numbers<[1], [0], [0], [1], [0, 0, 1, 1], [], []>} : vector<16x64xbf16>, vector<64x64xbf16>, vector<16x64xf32> -> vector<16x64xf32>
    %52 = arith.addf %47, %51 : vector<16x64xf32>
    %cst_33 = arith.constant 0.000000e+00 : f32
    %53 = vector.broadcast %cst_33 : f32 to vector<16x64xf32>
    %54 = arith.maximumf %52, %53 : vector<16x64xf32>
    %c0_34 = arith.constant 0 : index
    %c0_35 = arith.constant 0 : index
    %55 = vector.load %arg8[%c0_34, %c0_35] : memref<128x16xbf16, #tpu.memory_space<vmem>>, vector<128x16xbf16>
    %56 = arith.truncf %54 : vector<16x64xf32> to vector<16x64xbf16>
    %cst_36 = arith.constant dense<0.000000e+00> : vector<128x64xf32>
    %57 = tpu.matmul %55, %56, %cst_36 {dimension_numbers = #tpu.dot_dimension_numbers<[1], [0], [0], [1], [0, 0, 1, 1], [], []>} : vector<128x16xbf16>, vector<16x64xbf16>, vector<128x64xf32> -> vector<128x64xf32>
    %c0_37 = arith.constant 0 : index
    %c0_38 = arith.constant 0 : index
    %58 = vector.load %arg10[%c0_37, %c0_38] : memref<1x128xf32, #tpu.memory_space<vmem>>, vector<1x128xf32>
    %59 = vector.extract_strided_slice %57 {offsets = [0, 0], sizes = [32, 64], strides = [1, 1]} : vector<128x64xf32> to vector<32x64xf32>
    %60 = arith.truncf %59 : vector<32x64xf32> to vector<32x64xbf16>
    %c0_39 = arith.constant 0 : index
    %c0_40 = arith.constant 0 : index
    %61 = vector.load %arg9[%c0_39, %c0_40] : memref<256x128xbf16, #tpu.memory_space<vmem>>, vector<64x128xbf16>
    %cst_41 = arith.constant dense<0.000000e+00> : vector<32x128xf32>
    %62 = tpu.matmul %60, %61, %cst_41 {dimension_numbers = #tpu.dot_dimension_numbers<[1], [0], [0], [1], [0, 0, 1, 1], [], []>} : vector<32x64xbf16>, vector<64x128xbf16>, vector<32x128xf32> -> vector<32x128xf32>
    %63 = vector.broadcast %58 : vector<1x128xf32> to vector<32x128xf32>
    %64 = arith.addf %63, %62 : vector<32x128xf32>
    %65 = vector.extract_strided_slice %57 {offsets = [32, 0], sizes = [32, 64], strides = [1, 1]} : vector<128x64xf32> to vector<32x64xf32>
    %66 = arith.truncf %65 : vector<32x64xf32> to vector<32x64xbf16>
    %c64_42 = arith.constant 64 : index
    %c0_43 = arith.constant 0 : index
    %67 = vector.load %arg9[%c64_42, %c0_43] : memref<256x128xbf16, #tpu.memory_space<vmem>>, vector<64x128xbf16>
    %cst_44 = arith.constant dense<0.000000e+00> : vector<32x128xf32>
    %68 = tpu.matmul %66, %67, %cst_44 {dimension_numbers = #tpu.dot_dimension_numbers<[1], [0], [0], [1], [0, 0, 1, 1], [], []>} : vector<32x64xbf16>, vector<64x128xbf16>, vector<32x128xf32> -> vector<32x128xf32>
    %69 = arith.addf %64, %68 : vector<32x128xf32>
    %70 = vector.extract_strided_slice %57 {offsets = [64, 0], sizes = [32, 64], strides = [1, 1]} : vector<128x64xf32> to vector<32x64xf32>
    %71 = arith.truncf %70 : vector<32x64xf32> to vector<32x64xbf16>
    %c128_45 = arith.constant 128 : index
    %c0_46 = arith.constant 0 : index
    %72 = vector.load %arg9[%c128_45, %c0_46] : memref<256x128xbf16, #tpu.memory_space<vmem>>, vector<64x128xbf16>
    %cst_47 = arith.constant dense<0.000000e+00> : vector<32x128xf32>
    %73 = tpu.matmul %71, %72, %cst_47 {dimension_numbers = #tpu.dot_dimension_numbers<[1], [0], [0], [1], [0, 0, 1, 1], [], []>} : vector<32x64xbf16>, vector<64x128xbf16>, vector<32x128xf32> -> vector<32x128xf32>
    %74 = arith.addf %69, %73 : vector<32x128xf32>
    %75 = vector.extract_strided_slice %57 {offsets = [96, 0], sizes = [32, 64], strides = [1, 1]} : vector<128x64xf32> to vector<32x64xf32>
    %76 = arith.truncf %75 : vector<32x64xf32> to vector<32x64xbf16>
    %c192_48 = arith.constant 192 : index
    %c0_49 = arith.constant 0 : index
    %77 = vector.load %arg9[%c192_48, %c0_49] : memref<256x128xbf16, #tpu.memory_space<vmem>>, vector<64x128xbf16>
    %cst_50 = arith.constant dense<0.000000e+00> : vector<32x128xf32>
    %78 = tpu.matmul %76, %77, %cst_50 {dimension_numbers = #tpu.dot_dimension_numbers<[1], [0], [0], [1], [0, 0, 1, 1], [], []>} : vector<32x64xbf16>, vector<64x128xbf16>, vector<32x128xf32> -> vector<32x128xf32>
    %79 = arith.addf %74, %78 : vector<32x128xf32>
    %c0_51 = arith.constant 0 : index
    %c0_52 = arith.constant 0 : index
    %c0_53 = arith.constant 0 : index
    %80 = vector.load %arg11[%c0_51, %c0_52, %c0_53] : memref<1x32x128xf32, #tpu.memory_space<vmem>>, vector<1x32x128xf32>
    %81 = vector.shape_cast %80 : vector<1x32x128xf32> to vector<32x128xf32>
    %82 = vector.shape_cast %79 : vector<32x128xf32> to vector<1x32x128xf32>
    tpu.vector_store %arg11[%c0_51, %c0_52, %c0_53], %82 {strides = array<i32>} : memref<1x32x128xf32, #tpu.memory_space<vmem>>, vector<1x32x128xf32>,
    return
  }
  func.func @transform_0(%arg0: i32) -> (i32, i32, i32) {
    %c0_i32 = arith.constant 0 : i32
    %c0_i32_0 = arith.constant 0 : i32
    %c0_i32_1 = arith.constant 0 : i32
    return %arg0, %c0_i32, %c0_i32_0 : i32, i32, i32
  }
  func.func @transform_1(%arg0: i32) -> (i32, i32) {
    %c0_i32 = arith.constant 0 : i32
    %c0_i32_0 = arith.constant 0 : i32
    %c0_i32_1 = arith.constant 0 : i32
    return %c0_i32, %c0_i32_0 : i32, i32
  }
  func.func @transform_2(%arg0: i32) -> (i32, i32) {
    %c0_i32 = arith.constant 0 : i32
    %c0_i32_0 = arith.constant 0 : i32
    %c0_i32_1 = arith.constant 0 : i32
    return %c0_i32, %c0_i32_0 : i32, i32
  }
  func.func @transform_3(%arg0: i32) -> (i32, i32) {
    %c0_i32 = arith.constant 0 : i32
    %c0_i32_0 = arith.constant 0 : i32
    %c0_i32_1 = arith.constant 0 : i32
    return %c0_i32, %c0_i32_0 : i32, i32
  }
  func.func @transform_4(%arg0: i32) -> (i32, i32) {
    %c0_i32 = arith.constant 0 : i32
    %c0_i32_0 = arith.constant 0 : i32
    %c0_i32_1 = arith.constant 0 : i32
    return %c0_i32, %c0_i32_0 : i32, i32
  }
  func.func @transform_5(%arg0: i32) -> (i32, i32) {
    %c0_i32 = arith.constant 0 : i32
    %c0_i32_0 = arith.constant 0 : i32
    %c0_i32_1 = arith.constant 0 : i32
    return %c0_i32, %c0_i32_0 : i32, i32
  }
  func.func @transform_6(%arg0: i32) -> (i32, i32) {
    %c0_i32 = arith.constant 0 : i32
    %c0_i32_0 = arith.constant 0 : i32
    %c0_i32_1 = arith.constant 0 : i32
    return %c0_i32, %c0_i32_0 : i32, i32
  }
  func.func @transform_7(%arg0: i32) -> (i32, i32) {
    %c0_i32 = arith.constant 0 : i32
    %c0_i32_0 = arith.constant 0 : i32
    %c0_i32_1 = arith.constant 0 : i32
    return %c0_i32, %c0_i32_0 : i32, i32
  }
  func.func @transform_8(%arg0: i32) -> (i32, i32) {
    %c0_i32 = arith.constant 0 : i32
    %c0_i32_0 = arith.constant 0 : i32
    %c0_i32_1 = arith.constant 0 : i32
    return %c0_i32, %c0_i32_0 : i32, i32
  }
  func.func @transform_9(%arg0: i32) -> (i32, i32) {
    %c0_i32 = arith.constant 0 : i32
    %c0_i32_0 = arith.constant 0 : i32
    %c0_i32_1 = arith.constant 0 : i32
    return %c0_i32, %c0_i32_0 : i32, i32
  }
  func.func @transform_10(%arg0: i32) -> (i32, i32, i32) {
    %c0_i32 = arith.constant 0 : i32
    %c0_i32_0 = arith.constant 0 : i32
    %c0_i32_1 = arith.constant 0 : i32
    return %arg0, %c0_i32, %c0_i32_0 : i32, i32, i32
  }
}

</mosaic_0001>

<llo_original>
// kernel: decoder_forward.1
$region0: #{decoder_forward.1}
  #allocation0 [shape = 'u32[]', space=smem, size = 0x4, offset = 0x4, fixed_abs, tag = 'smem constant byte address 0x4 - core index']
  #allocation1 [shape = 'u32[144,128]{1,0:T(1,128)}', space=vmem, size = 0x12000, scoped, tag = 'internal scratch']
  %s0 = inlined_call_operand.vmem [shape: bf16[2,4,64], index: 0, kind: input, shape index: {}]
  %s1 = inlined_call_operand.vmem [shape: bf16[32,4], index: 1, kind: input, shape index: {}]
  %s2 = inlined_call_operand.vmem [shape: bf16[256,64], index: 2, kind: input, shape index: {}]
  %s3 = inlined_call_operand.vmem [shape: f32[1,64], index: 3, kind: input, shape index: {}]
  %s4 = inlined_call_operand.vmem [shape: bf16[64,8], index: 4, kind: input, shape index: {}]
  %s5 = inlined_call_operand.vmem [shape: bf16[256,64], index: 5, kind: input, shape index: {}]
  %s6 = inlined_call_operand.vmem [shape: f32[1,64], index: 6, kind: input, shape index: {}]
  %s7 = inlined_call_operand.vmem [shape: bf16[128,16], index: 7, kind: input, shape index: {}]
  %s8 = inlined_call_operand.vmem [shape: bf16[256,128], index: 8, kind: input, shape index: {}]
  %s9 = inlined_call_operand.vmem [shape: f32[1,128], index: 9, kind: input, shape index: {}]
  %s10 = inlined_call_operand.vmem [shape: f32[2,32,128], index: 10, kind: output, shape index: {}]
  %s11 = sld [smem:[#allocation0]]
  $region73: #{decoder_forward.1} parent=0
    _
  %s13 = ssub.s32 1, %s11
  %s14 = scalar_select 0, %s13, %s11
  loop: start=0, step=1, limit=4
  $region2: #{decoder_forward.1} parent=0 // loop_pre_header
    _
  $region3: #{decoder_forward.1} parent=0 // loop_header
    %s16 = sphi 0, %s20
    %p17 = scmp.ge.s32.totalorder %s16, 4
    %s26 = sphi 0, %s28
    %s29 = sphi 0, %s26
    %s30 = sphi 0, %s29
    %s46 = sphi 0, %s30
    %s50 = sphi 0, %s50
    %s52 = sphi 0, %s50
    %s53 = sphi 0, %s52
    %s67 = sphi 0, %s53
    %s71 = sphi 0, %s71
    %s73 = sphi 0, %s71
    %s74 = sphi 0, %s73
    %s88 = sphi 0, %s74
    %s92 = sphi 0, %s92
    %s94 = sphi 0, %s92
    %s95 = sphi 0, %s94
    %s109 = sphi 0, %s95
    %s113 = sphi 0, %s113
    %s115 = sphi 0, %s113
    %s116 = sphi 0, %s115
    %s130 = sphi 0, %s116
    %s134 = sphi 0, %s134
    %s136 = sphi 0, %s134
    %s137 = sphi 0, %s136
    %s151 = sphi 0, %s137
    %s155 = sphi 0, %s155
    %s157 = sphi 0, %s155
    %s158 = sphi 0, %s157
    %s172 = sphi 0, %s158
    %s176 = sphi 0, %s176
    %s178 = sphi 0, %s176
    %s179 = sphi 0, %s178
    %s193 = sphi 0, %s179
    %s197 = sphi 0, %s197
    %s199 = sphi 0, %s197
    %s200 = sphi 0, %s199
    %s214 = sphi 0, %s200
    %s218 = sphi 0, %s218
    %s220 = sphi 0, %s218
    %s221 = sphi 0, %s220
    %s235 = sphi 0, %s221
    %s241 = sphi 0, %s243
    %s244 = sphi 0, %s241
    %s245 = sphi 0, %s244
    %s261 = sphi 0, %s245
  $region4: #{decoder_forward.1} parent=0 // loop_header_branch
    %19 = sbr.rel (%p17) target = $region8
  $region5: #{decoder_forward.1} parent=0 // loop_body
    %s21 = ssub.s32 %s16, 1
    %s22 = ssub.s32 %s16, 2
    %s23 = sadd.s32 %s16, 1
    %s24 = ssub.s32 %s16, %s23
    %p25 = scmp.eq.s32.totalorder %s24, 0
    %s27 = sadd.s32 %s26, 1
    %s28 = scalar_select %p25, %s26, %s27
    %p31 = pneg %p25
    %p32 = scmp.eq.s32.totalorder %s16, 1
    %p33 = por %p31, %p32
    %p34 = scmp.ne.s32.totalorder %s26, %s29
    %p35 = scmp.eq.s32.totalorder %s16, 0
    %p36 = por %p34, %p35
    %p37 = scmp.ne.s32.totalorder %s26, %s29
    %p38 = scmp.eq.s32.totalorder %s21, 1
    %p39 = por %p37, %p38
    %p40 = scmp.ne.s32.totalorder %s29, %s30
    %p41 = scmp.eq.s32.totalorder %s21, 0
    %p42 = por %p40, %p41
    %p43 = scmp.ne.s32.totalorder %s29, %s30
    %p44 = scmp.eq.s32.totalorder %s22, 1
    %p45 = por %p43, %p44
    %p47 = scmp.ne.s32.totalorder %s30, %s46
    %p48 = scmp.eq.s32.totalorder %s22, 0
    %p49 = por %p47, %p48
    %s51 = sadd.s32 %s50, 1
    %p54 = scmp.eq.s32.totalorder %s16, 1
    %p55 = scmp.ne.s32.totalorder %s50, %s52
    %p56 = scmp.eq.s32.totalorder %s16, 0
    %p57 = por %p55, %p56
    %p58 = scmp.ne.s32.totalorder %s50, %s52
    %p59 = scmp.eq.s32.totalorder %s21, 1
    %p60 = por %p58, %p59
    %p61 = scmp.ne.s32.totalorder %s52, %s53
    %p62 = scmp.eq.s32.totalorder %s21, 0
    %p63 = por %p61, %p62
    %p64 = scmp.ne.s32.totalorder %s52, %s53
    %p65 = scmp.eq.s32.totalorder %s22, 1
    %p66 = por %p64, %p65
    %p68 = scmp.ne.s32.totalorder %s53, %s67
    %p69 = scmp.eq.s32.totalorder %s22, 0
    %p70 = por %p68, %p69
    %s72 = sadd.s32 %s71, 1
    %p75 = scmp.eq.s32.totalorder %s16, 1
    %p76 = scmp.ne.s32.totalorder %s71, %s73
    %p77 = scmp.eq.s32.totalorder %s16, 0
    %p78 = por %p76, %p77
    %p79 = scmp.ne.s32.totalorder %s71, %s73
    %p80 = scmp.eq.s32.totalorder %s21, 1
    %p81 = por %p79, %p80
    %p82 = scmp.ne.s32.totalorder %s73, %s74
    %p83 = scmp.eq.s32.totalorder %s21, 0
    %p84 = por %p82, %p83
    %p85 = scmp.ne.s32.totalorder %s73, %s74
    %p86 = scmp.eq.s32.totalorder %s22, 1
    %p87 = por %p85, %p86
    %p89 = scmp.ne.s32.totalorder %s74, %s88
    %p90 = scmp.eq.s32.totalorder %s22, 0
    %p91 = por %p89, %p90
    %s93 = sadd.s32 %s92, 1
    %p96 = scmp.eq.s32.totalorder %s16, 1
    %p97 = scmp.ne.s32.totalorder %s92, %s94
    %p98 = scmp.eq.s32.totalorder %s16, 0
    %p99 = por %p97, %p98
    %p100 = scmp.ne.s32.totalorder %s92, %s94
    %p101 = scmp.eq.s32.totalorder %s21, 1
    %p102 = por %p100, %p101
    %p103 = scmp.ne.s32.totalorder %s94, %s95
    %p104 = scmp.eq.s32.totalorder %s21, 0
    %p105 = por %p103, %p104
    %p106 = scmp.ne.s32.totalorder %s94, %s95
    %p107 = scmp.eq.s32.totalorder %s22, 1
    %p108 = por %p106, %p107
    %p110 = scmp.ne.s32.totalorder %s95, %s109
    %p111 = scmp.eq.s32.totalorder %s22, 0
    %p112 = por %p110, %p111
    %s114 = sadd.s32 %s113, 1
    %p117 = scmp.eq.s32.totalorder %s16, 1
    %p118 = scmp.ne.s32.totalorder %s113, %s115
    %p119 = scmp.eq.s32.totalorder %s16, 0
    %p120 = por %p118, %p119
    %p121 = scmp.ne.s32.totalorder %s113, %s115
    %p122 = scmp.eq.s32.totalorder %s21, 1
    %p123 = por %p121, %p122
    %p124 = scmp.ne.s32.totalorder %s115, %s116
    %p125 = scmp.eq.s32.totalorder %s21, 0
    %p126 = por %p124, %p125
    %p127 = scmp.ne.s32.totalorder %s115, %s116
    %p128 = scmp.eq.s32.totalorder %s22, 1
    %p129 = por %p127, %p128
    %p131 = scmp.ne.s32.totalorder %s116, %s130
    %p132 = scmp.eq.s32.totalorder %s22, 0
    %p133 = por %p131, %p132
    %s135 = sadd.s32 %s134, 1
    %p138 = scmp.eq.s32.totalorder %s16, 1
    %p139 = scmp.ne.s32.totalorder %s134, %s136
    %p140 = scmp.eq.s32.totalorder %s16, 0
    %p141 = por %p139, %p140
    %p142 = scmp.ne.s32.totalorder %s134, %s136
    %p143 = scmp.eq.s32.totalorder %s21, 1
    %p144 = por %p142, %p143
    %p145 = scmp.ne.s32.totalorder %s136, %s137
    %p146 = scmp.eq.s32.totalorder %s21, 0
    %p147 = por %p145, %p146
    %p148 = scmp.ne.s32.totalorder %s136, %s137
    %p149 = scmp.eq.s32.totalorder %s22, 1
    %p150 = por %p148, %p149
    %p152 = scmp.ne.s32.totalorder %s137, %s151
    %p153 = scmp.eq.s32.totalorder %s22, 0
    %p154 = por %p152, %p153
    %s156 = sadd.s32 %s155, 1
    %p159 = scmp.eq.s32.totalorder %s16, 1
    %p160 = scmp.ne.s32.totalorder %s155, %s157
    %p161 = scmp.eq.s32.totalorder %s16, 0
    %p162 = por %p160, %p161
    %p163 = scmp.ne.s32.totalorder %s155, %s157
    %p164 = scmp.eq.s32.totalorder %s21, 1
    %p165 = por %p163, %p164
    %p166 = scmp.ne.s32.totalorder %s157, %s158
    %p167 = scmp.eq.s32.totalorder %s21, 0
    %p168 = por %p166, %p167
    %p169 = scmp.ne.s32.totalorder %s157, %s158
    %p170 = scmp.eq.s32.totalorder %s22, 1
    %p171 = por %p169, %p170
    %p173 = scmp.ne.s32.totalorder %s158, %s172
    %p174 = scmp.eq.s32.totalorder %s22, 0
    %p175 = por %p173, %p174
    %s177 = sadd.s32 %s176, 1
    %p180 = scmp.eq.s32.totalorder %s16, 1
    %p181 = scmp.ne.s32.totalorder %s176, %s178
    %p182 = scmp.eq.s32.totalorder %s16, 0
    %p183 = por %p181, %p182
    %p184 = scmp.ne.s32.totalorder %s176, %s178
    %p185 = scmp.eq.s32.totalorder %s21, 1
    %p186 = por %p184, %p185
    %p187 = scmp.ne.s32.totalorder %s178, %s179
    %p188 = scmp.eq.s32.totalorder %s21, 0
    %p189 = por %p187, %p188
    %p190 = scmp.ne.s32.totalorder %s178, %s179
    %p191 = scmp.eq.s32.totalorder %s22, 1
    %p192 = por %p190, %p191
    %p194 = scmp.ne.s32.totalorder %s179, %s193
    %p195 = scmp.eq.s32.totalorder %s22, 0
    %p196 = por %p194, %p195
    %s198 = sadd.s32 %s197, 1
    %p201 = scmp.eq.s32.totalorder %s16, 1
    %p202 = scmp.ne.s32.totalorder %s197, %s199
    %p203 = scmp.eq.s32.totalorder %s16, 0
    %p204 = por %p202, %p203
    %p205 = scmp.ne.s32.totalorder %s197, %s199
    %p206 = scmp.eq.s32.totalorder %s21, 1
    %p207 = por %p205, %p206
    %p208 = scmp.ne.s32.totalorder %s199, %s200
    %p209 = scmp.eq.s32.totalorder %s21, 0
    %p210 = por %p208, %p209
    %p211 = scmp.ne.s32.totalorder %s199, %s200
    %p212 = scmp.eq.s32.totalorder %s22, 1
    %p213 = por %p211, %p212
    %p215 = scmp.ne.s32.totalorder %s200, %s214
    %p216 = scmp.eq.s32.totalorder %s22, 0
    %p217 = por %p215, %p216
    %s219 = sadd.s32 %s218, 1
    %p222 = scmp.eq.s32.totalorder %s16, 1
    %p223 = scmp.ne.s32.totalorder %s218, %s220
    %p224 = scmp.eq.s32.totalorder %s16, 0
    %p225 = por %p223, %p224
    %p226 = scmp.ne.s32.totalorder %s218, %s220
    %p227 = scmp.eq.s32.totalorder %s21, 1
    %p228 = por %p226, %p227
    %p229 = scmp.ne.s32.totalorder %s220, %s221
    %p230 = scmp.eq.s32.totalorder %s21, 0
    %p231 = por %p229, %p230
    %p232 = scmp.ne.s32.totalorder %s220, %s221
    %p233 = scmp.eq.s32.totalorder %s22, 1
    %p234 = por %p232, %p233
    %p236 = scmp.ne.s32.totalorder %s221, %s235
    %p237 = scmp.eq.s32.totalorder %s22, 0
    %p238 = por %p236, %p237
    %s239 = ssub.s32 %s16, %s23
    %p240 = scmp.eq.s32.totalorder %s239, 0
    %s242 = sadd.s32 %s241, 1
    %s243 = scalar_select %p240, %s241, %s242
    %p246 = pneg %p240
    %p247 = scmp.eq.s32.totalorder %s16, 1
    %p248 = por %p246, %p247
    %p249 = scmp.ne.s32.totalorder %s241, %s244
    %p250 = scmp.eq.s32.totalorder %s16, 0
    %p251 = por %p249, %p250
    %p252 = scmp.ne.s32.totalorder %s241, %s244
    %p253 = scmp.eq.s32.totalorder %s21, 1
    %p254 = por %p252, %p253
    %p255 = scmp.ne.s32.totalorder %s244, %s245
    %p256 = scmp.eq.s32.totalorder %s21, 0
    %p257 = por %p255, %p256
    %p258 = scmp.ne.s32.totalorder %s244, %s245
    %p259 = scmp.eq.s32.totalorder %s22, 1
    %p260 = por %p258, %p259
    %p262 = scmp.ne.s32.totalorder %s245, %s261
    %p263 = scmp.eq.s32.totalorder %s22, 0
    %p264 = por %p262, %p263
    %p265 = scmp.le.s32.totalorder 1, %s16
    %p266 = scmp.lt.s32.totalorder %s16, 3
    %p267 = pnand %p265, %p266
    %p268 = pneg %p267
    // Predicated region
    $region9: #{decoder_forward.1} parent=5 // pred_check
      _
    $region10: #{decoder_forward.1} parent=5 // pred_check_branch
      %270 = sbr.rel (%p267) target = $region12
    $region11: #{decoder_forward.1} parent=5 // pred_region
      %s271 = ssub.s32 %s16, 1
      // Predicated region
      $region13: #{decoder_forward.1} parent=11 // pred_check
        %p272 = pneg %p63
      $region14: #{decoder_forward.1} parent=11 // pred_check_branch
        %274 = sbr.rel (%p272) target = $region16
      $region15: #{decoder_forward.1} parent=11 // pred_region
        _
      $region16: #{decoder_forward.1} parent=11 // pred_fallthru
        _
      // Predicated region
      $region17: #{decoder_forward.1} parent=11 // pred_check
        %p275 = pneg %p84
      $region18: #{decoder_forward.1} parent=11 // pred_check_branch
        %277 = sbr.rel (%p275) target = $region20
      $region19: #{decoder_forward.1} parent=11 // pred_region
        _
      $region20: #{decoder_forward.1} parent=11 // pred_fallthru
        _
      // Predicated region
      $region21: #{decoder_forward.1} parent=11 // pred_check
        %p278 = pneg %p105
      $region22: #{decoder_forward.1} parent=11 // pred_check_branch
        %280 = sbr.rel (%p278) target = $region24
      $region23: #{decoder_forward.1} parent=11 // pred_region
        _
      $region24: #{decoder_forward.1} parent=11 // pred_fallthru
        _
      // Predicated region
      $region25: #{decoder_forward.1} parent=11 // pred_check
        %p281 = pneg %p126
      $region26: #{decoder_forward.1} parent=11 // pred_check_branch
        %283 = sbr.rel (%p281) target = $region28
      $region27: #{decoder_forward.1} parent=11 // pred_region
        _
      $region28: #{decoder_forward.1} parent=11 // pred_fallthru
        _
      // Predicated region
      $region29: #{decoder_forward.1} parent=11 // pred_check
        %p284 = pneg %p147
      $region30: #{decoder_forward.1} parent=11 // pred_check_branch
        %286 = sbr.rel (%p284) target = $region32
      $region31: #{decoder_forward.1} parent=11 // pred_region
        _
      $region32: #{decoder_forward.1} parent=11 // pred_fallthru
        _
      // Predicated region
      $region33: #{decoder_forward.1} parent=11 // pred_check
        %p287 = pneg %p168
      $region34: #{decoder_forward.1} parent=11 // pred_check_branch
        %289 = sbr.rel (%p287) target = $region36
      $region35: #{decoder_forward.1} parent=11 // pred_region
        _
      $region36: #{decoder_forward.1} parent=11 // pred_fallthru
        _
      // Predicated region
      $region37: #{decoder_forward.1} parent=11 // pred_check
        %p290 = pneg %p189
      $region38: #{decoder_forward.1} parent=11 // pred_check_branch
        %292 = sbr.rel (%p290) target = $region40
      $region39: #{decoder_forward.1} parent=11 // pred_region
        _
      $region40: #{decoder_forward.1} parent=11 // pred_fallthru
        _
      // Predicated region
      $region41: #{decoder_forward.1} parent=11 // pred_check
        %p293 = pneg %p210
      $region42: #{decoder_forward.1} parent=11 // pred_check_branch
        %295 = sbr.rel (%p293) target = $region44
      $region43: #{decoder_forward.1} parent=11 // pred_region
        _
      $region44: #{decoder_forward.1} parent=11 // pred_fallthru
        _
      // Predicated region
      $region45: #{decoder_forward.1} parent=11 // pred_check
        %p296 = pneg %p231
      $region46: #{decoder_forward.1} parent=11 // pred_check_branch
        %298 = sbr.rel (%p296) target = $region48
      $region47: #{decoder_forward.1} parent=11 // pred_region
        _
      $region48: #{decoder_forward.1} parent=11 // pred_fallthru
        _
    $region12: #{decoder_forward.1} parent=5 // pred_fallthru
      _
    %p299 = scmp.lt.s32.totalorder %s16, 2
    // Predicated region
    $region49: #{decoder_forward.1} parent=5 // pred_check
      %p300 = pneg %p299
    $region50: #{decoder_forward.1} parent=5 // pred_check_branch
      %302 = sbr.rel (%p300) target = $region52
    $region51: #{decoder_forward.1} parent=5 // pred_region
      // Predicated region
      $region53: #{decoder_forward.1} parent=51 // pred_check
        %p303 = pneg %p36
      $region54: #{decoder_forward.1} parent=51 // pred_check_branch
        %305 = sbr.rel (%p303) target = $region56
      $region55: #{decoder_forward.1} parent=51 // pred_region
        %p306 = scmp.lt.s32.totalorder %s16, 1
        %s307 = scalar_select %p306, %s16, 1
        %s308 = smul.addr %s307, 2
        %s309 = scalar_lea.vmem %s0, %s308
      $region56: #{decoder_forward.1} parent=51 // pred_fallthru
        _
    $region52: #{decoder_forward.1} parent=5 // pred_fallthru
      _
    %p310 = scmp.le.s32.totalorder 1, %s16
    %p311 = scmp.lt.s32.totalorder %s16, 3
    %p312 = pnand %p310, %p311
    %p313 = pneg %p312
    // Predicated region
    $region57: #{decoder_forward.1} parent=5 // pred_check
      _
    $region58: #{decoder_forward.1} parent=5 // pred_check_branch
      %315 = sbr.rel (%p312) target = $region60
    $region59: #{decoder_forward.1} parent=5 // pred_region
      %s316 = ssub.s32 %s16, 1
      %p317 = scmp.lt.s32.totalorder %s21, 1
      %s318 = scalar_select %p317, %s21, 1
      %s319 = smul.addr %s318, 2
      %s320 = scalar_lea.vmem %s0, %s319
      %p321 = pneg %p42
      %p322 = pneg %p39
      %p323 = pneg %p63
      %p324 = pneg %p60
      %p325 = pneg %p84
      %p326 = pneg %p81
      %p327 = pneg %p105
      %p328 = pneg %p102
      %p329 = pneg %p126
      %p330 = pneg %p123
      %p331 = pneg %p147
      %p332 = pneg %p144
      %p333 = pneg %p168
      %p334 = pneg %p165
      %p335 = pneg %p189
      %p336 = pneg %p186
      %p337 = pneg %p210
      %p338 = pneg %p207
      %p339 = pneg %p231
      %p340 = pneg %p228
      %p341 = pneg %p257
      %p342 = pneg %p254
      %p343 = scmp.lt.s32.totalorder %s21, 1
      %s344 = scalar_select %p343, %s21, 1
      %s345 = smul.addr %s344, 4
      %s346 = smul.addr %s345, 8
      %s347 = scalar_lea.vmem %s10, %s346
      %p348 = scmp.lt.s32.totalorder %s21, 1
      %s349 = scalar_select %p348, %s21, 1
      %s350 = smul.addr %s349, 2
      %s351 = scalar_lea.vmem %s0, %s350
      %p352 = scmp.lt.s32.totalorder %s21, 1
      %s353 = scalar_select %p352, %s21, 1
      %s354 = smul.addr %s353, 4
      %s355 = smul.addr %s354, 8
      %s356 = scalar_lea.vmem %s10, %s355
      %v358 = vld [vmem:[%s351] sm:$0x3]
      %v359 = vld [vmem:[%s1] sm:$0xf]
      %v360 = vld [vmem:[%s1 + $0x4] sm:$0xf]
      %v361 = vld [vmem:[%s1 + $0x8] sm:$0xf]
      %v362 = vld [vmem:[%s1 + $0xc] sm:$0xf]
      %v367 = vunpack.c.l.b16 %v359
      %v368 = vunpack.c.l.b16 %v360
      %v369 = vunpack.c.l.b16 %v361
      %v370 = vunpack.c.l.b16 %v362
      %v371 = vpack.c.b16 %v368, %v367
      %v372 = vpack.c.b16 %v370, %v369
      %vm373 = vcmask 31744
      %v375 = vsel %vm373, %v371, 0
      %v378 = vsel %vm373, %v372, 0
      %vm380 = vcmask 1041408
      %v382 = vsel %vm380, %v358, 0
      %384 = vmatprep.subr.bf16.mxu0 0
      %385 = vmatpush1.bf16.msra.mxu0 0
      %386 = vmatprep.subr.bf16.mxu0 0
      %387 = vmatpush1.bf16.msra.mxu0 0
      %388 = vmatprep.subr.bf16.mxu0 0
      %389 = vmatpush1.bf16.msra.mxu0 0
      %390 = vmatprep.subr.bf16.mxu0 0
      %391 = vmatpush1.bf16.msra.mxu0 0
      %392 = vmatprep.subr.bf16.mxu0 0
      %393 = vmatpush1.bf16.msra.mxu0 0
      %394 = vmatprep.subr.bf16.mxu0 0
      %395 = vmatpush1.bf16.msra.mxu0 0
      %396 = vmatprep.subr.bf16.mxu0 0
      %397 = vmatpush1.bf16.msra.mxu0 0
      %398 = vmatprep.subr.bf16.mxu0 0
      %399 = vmatpush1.bf16.msra.mxu0 %v382
      %400 = vmatprep.subr.bf16.mxu0 0
      %401 = vmatpush2.bf16.msra.mxu0 0
      %402 = vmatprep.subr.bf16.mxu0 0
      %403 = vmatpush2.bf16.msra.mxu0 0
      %404 = vmatprep.subr.bf16.mxu0 0
      %405 = vmatpush2.bf16.msra.mxu0 0
      %406 = vmatprep.subr.bf16.mxu0 0
      %407 = vmatpush2.bf16.msra.mxu0 0
      %408 = vmatprep.subr.bf16.mxu0 0
      %409 = vmatpush2.bf16.msra.mxu0 0
      %410 = vmatprep.subr.bf16.mxu0 0
      %411 = vmatpush2.bf16.msra.mxu0 0
      %412 = vmatprep.subr.bf16.mxu0 0
      %413 = vmatpush2.bf16.msra.mxu0 0
      %414 = vmatprep.subr.bf16.mxu0 0
      %415 = vmatpush2.bf16.msra.mxu0 0
      %416 = vmatprep.mubr.bf16.mxu0 0
      %417 = vmatmul.mubr.bf16.gmra.mxu0 %v375
      %v418 = vpop.f32.mrf.mxu0
      %v419 = vadd.f32 0.0, %v418
      %v420 = vpop.f32.mrf.mxu0
      %v421 = vpop.f32.mrf.mxu0
      %v422 = vadd.f32 0.0, %v421
      %v423 = vpop.f32.mrf.mxu0
      %424 = vmatprep.mubr.bf16.mxu0 0
      %425 = vmatmul.mubr.bf16.gmra.mxu0 %v378
      %v426 = vpop.f32.mrf.mxu0
      %v427 = vadd.f32 0.0, %v426
      %v428 = vpop.f32.mrf.mxu0
      %v429 = vpop.f32.mrf.mxu0
      %v430 = vadd.f32 0.0, %v429
      %v431 = vpop.f32.mrf.mxu0
      %432 = vdwg.mxu0
      %v433 = vld [vmem:[%s3] sm:$0x1]
      %v434 = vpack.c.bf16 %v419, %v419
      %v435 = vld [vmem:[%s2] sm:$0xf]
      %v436 = vld [vmem:[%s2 + $0x4] sm:$0xf]
      %v437 = vld [vmem:[%s2 + $0x8] sm:$0xf]
      %v438 = vld [vmem:[%s2 + $0xc] sm:$0xf]
      %v439 = vld [vmem:[%s2 + $0x10] sm:$0xf]
      %v440 = vld [vmem:[%s2 + $0x14] sm:$0xf]
      %v441 = vld [vmem:[%s2 + $0x18] sm:$0xf]
      %v442 = vld [vmem:[%s2 + $0x1c] sm:$0xf]
      %v451 = vunpack.c.l.b16 %v435
      %v452 = vunpack.c.l.b16 %v436
      %v453 = vunpack.c.l.b16 %v437
      %v454 = vunpack.c.l.b16 %v438
      %v455 = vunpack.c.l.b16 %v439
      %v456 = vunpack.c.l.b16 %v440
      %v457 = vunpack.c.l.b16 %v441
      %v458 = vunpack.c.l.b16 %v442
      %v459 = vpack.c.b16 %v452, %v451
      %v460 = vpack.c.b16 %v454, %v453
      %v461 = vpack.c.b16 %v456, %v455
      %v462 = vpack.c.b16 %v458, %v457
      %vm467 = vcmask 523264
      %v469 = vsel %vm467, %v434, 0
      %471 = vmatprep.subr.bf16.mxu0 0
      %472 = vmatpush1.bf16.msra.mxu0 0
      %473 = vmatprep.subr.bf16.mxu0 0
      %474 = vmatpush1.bf16.msra.mxu0 0
      %475 = vmatprep.subr.bf16.mxu0 0
      %476 = vmatpush1.bf16.msra.mxu0 0
      %477 = vmatprep.subr.bf16.mxu0 0
      %478 = vmatpush1.bf16.msra.mxu0 0
      %479 = vmatprep.subr.bf16.mxu0 0
      %480 = vmatpush1.bf16.msra.mxu0 %v462
      %481 = vmatprep.subr.bf16.mxu0 0
      %482 = vmatpush1.bf16.msra.mxu0 %v461
      %483 = vmatprep.subr.bf16.mxu0 0
      %484 = vmatpush1.bf16.msra.mxu0 %v460
      %485 = vmatprep.subr.bf16.mxu0 0
      %486 = vmatpush1.bf16.msra.mxu0 %v459
      %487 = vmatprep.subr.bf16.mxu0 0
      %488 = vmatpush2.bf16.msra.mxu0 0
      %489 = vmatprep.subr.bf16.mxu0 0
      %490 = vmatpush2.bf16.msra.mxu0 0
      %491 = vmatprep.subr.bf16.mxu0 0
      %492 = vmatpush2.bf16.msra.mxu0 0
      %493 = vmatprep.subr.bf16.mxu0 0
      %494 = vmatpush2.bf16.msra.mxu0 0
      %495 = vmatprep.subr.bf16.mxu0 0
      %496 = vmatpush2.bf16.msra.mxu0 0
      %497 = vmatprep.subr.bf16.mxu0 0
      %498 = vmatpush2.bf16.msra.mxu0 0
      %499 = vmatprep.subr.bf16.mxu0 0
      %500 = vmatpush2.bf16.msra.mxu0 0
      %501 = vmatprep.subr.bf16.mxu0 0
      %502 = vmatpush2.bf16.msra.mxu0 0
      %503 = vmatprep.mubr.bf16.mxu0 0
      %504 = vmatmul.mubr.bf16.gmra.mxu0 %v469
      %v505 = vpop.f32.mrf.mxu0
      %v506 = vadd.f32 0.0, %v505
      %v507 = vpop.f32.mrf.mxu0
      %v508 = vpop.f32.mrf.mxu0
      %v509 = vpop.f32.mrf.mxu0
      %510 = vdwg.mxu0
      %v512 = vlaneseq
      %v513 = vshrl.u32 %v512, 7
      %v514 = vsub.s32 0, %v513
      %v515 = vrot.slane %v433, %v514
      %v517 = vadd.f32 %v515, %v506
      %v518 = vpack.c.bf16 %v422, %v422
      %v519 = vld [vmem:[%s2 + $0x20] sm:$0xf]
      %v520 = vld [vmem:[%s2 + $0x24] sm:$0xf]
      %v521 = vld [vmem:[%s2 + $0x28] sm:$0xf]
      %v522 = vld [vmem:[%s2 + $0x2c] sm:$0xf]
      %v523 = vld [vmem:[%s2 + $0x30] sm:$0xf]
      %v524 = vld [vmem:[%s2 + $0x34] sm:$0xf]
      %v525 = vld [vmem:[%s2 + $0x38] sm:$0xf]
      %v526 = vld [vmem:[%s2 + $0x3c] sm:$0xf]
      %v535 = vunpack.c.l.b16 %v519
      %v536 = vunpack.c.l.b16 %v520
      %v537 = vunpack.c.l.b16 %v521
      %v538 = vunpack.c.l.b16 %v522
      %v539 = vunpack.c.l.b16 %v523
      %v540 = vunpack.c.l.b16 %v524
      %v541 = vunpack.c.l.b16 %v525
      %v542 = vunpack.c.l.b16 %v526
      %v543 = vpack.c.b16 %v536, %v535
      %v544 = vpack.c.b16 %v538, %v537
      %v545 = vpack.c.b16 %v540, %v539
      %v546 = vpack.c.b16 %v542, %v541
      %v552 = vsel %vm467, %v518, 0
      %554 = vmatprep.subr.bf16.mxu0 0
      %555 = vmatpush1.bf16.msra.mxu0 0
      %556 = vmatprep.subr.bf16.mxu0 0
      %557 = vmatpush1.bf16.msra.mxu0 0
      %558 = vmatprep.subr.bf16.mxu0 0
      %559 = vmatpush1.bf16.msra.mxu0 0
      %560 = vmatprep.subr.bf16.mxu0 0
      %561 = vmatpush1.bf16.msra.mxu0 0
      %562 = vmatprep.subr.bf16.mxu0 0
      %563 = vmatpush1.bf16.msra.mxu0 %v546
      %564 = vmatprep.subr.bf16.mxu0 0
      %565 = vmatpush1.bf16.msra.mxu0 %v545
      %566 = vmatprep.subr.bf16.mxu0 0
      %567 = vmatpush1.bf16.msra.mxu0 %v544
      %568 = vmatprep.subr.bf16.mxu0 0
      %569 = vmatpush1.bf16.msra.mxu0 %v543
      %570 = vmatprep.subr.bf16.mxu0 0
      %571 = vmatpush2.bf16.msra.mxu0 0
      %572 = vmatprep.subr.bf16.mxu0 0
      %573 = vmatpush2.bf16.msra.mxu0 0
      %574 = vmatprep.subr.bf16.mxu0 0
      %575 = vmatpush2.bf16.msra.mxu0 0
      %576 = vmatprep.subr.bf16.mxu0 0
      %577 = vmatpush2.bf16.msra.mxu0 0
      %578 = vmatprep.subr.bf16.mxu0 0
      %579 = vmatpush2.bf16.msra.mxu0 0
      %580 = vmatprep.subr.bf16.mxu0 0
      %581 = vmatpush2.bf16.msra.mxu0 0
      %582 = vmatprep.subr.bf16.mxu0 0
      %583 = vmatpush2.bf16.msra.mxu0 0
      %584 = vmatprep.subr.bf16.mxu0 0
      %585 = vmatpush2.bf16.msra.mxu0 0
      %586 = vmatprep.mubr.bf16.mxu0 0
      %587 = vmatmul.mubr.bf16.gmra.mxu0 %v552
      %v588 = vpop.f32.mrf.mxu0
      %v589 = vadd.f32 0.0, %v588
      %v590 = vpop.f32.mrf.mxu0
      %v591 = vpop.f32.mrf.mxu0
      %v592 = vpop.f32.mrf.mxu0
      %593 = vdwg.mxu0
      %v594 = vadd.f32 %v517, %v589
      %v595 = vpack.c.bf16 %v427, %v427
      %v596 = vld [vmem:[%s2 + $0x40] sm:$0xf]
      %v597 = vld [vmem:[%s2 + $0x44] sm:$0xf]
      %v598 = vld [vmem:[%s2 + $0x48] sm:$0xf]
      %v599 = vld [vmem:[%s2 + $0x4c] sm:$0xf]
      %v600 = vld [vmem:[%s2 + $0x50] sm:$0xf]
      %v601 = vld [vmem:[%s2 + $0x54] sm:$0xf]
      %v602 = vld [vmem:[%s2 + $0x58] sm:$0xf]
      %v603 = vld [vmem:[%s2 + $0x5c] sm:$0xf]
      %v612 = vunpack.c.l.b16 %v596
      %v613 = vunpack.c.l.b16 %v597
      %v614 = vunpack.c.l.b16 %v598
      %v615 = vunpack.c.l.b16 %v599
      %v616 = vunpack.c.l.b16 %v600
      %v617 = vunpack.c.l.b16 %v601
      %v618 = vunpack.c.l.b16 %v602
      %v619 = vunpack.c.l.b16 %v603
      %v620 = vpack.c.b16 %v613, %v612
      %v621 = vpack.c.b16 %v615, %v614
      %v622 = vpack.c.b16 %v617, %v616
      %v623 = vpack.c.b16 %v619, %v618
      %v629 = vsel %vm467, %v595, 0
      %631 = vmatprep.subr.bf16.mxu0 0
      %632 = vmatpush1.bf16.msra.mxu0 0
      %633 = vmatprep.subr.bf16.mxu0 0
      %634 = vmatpush1.bf16.msra.mxu0 0
      %635 = vmatprep.subr.bf16.mxu0 0
      %636 = vmatpush1.bf16.msra.mxu0 0
      %637 = vmatprep.subr.bf16.mxu0 0
      %638 = vmatpush1.bf16.msra.mxu0 0
      %639 = vmatprep.subr.bf16.mxu0 0
      %640 = vmatpush1.bf16.msra.mxu0 %v623
      %641 = vmatprep.subr.bf16.mxu0 0
      %642 = vmatpush1.bf16.msra.mxu0 %v622
      %643 = vmatprep.subr.bf16.mxu0 0
      %644 = vmatpush1.bf16.msra.mxu0 %v621
      %645 = vmatprep.subr.bf16.mxu0 0
      %646 = vmatpush1.bf16.msra.mxu0 %v620
      %647 = vmatprep.subr.bf16.mxu0 0
      %648 = vmatpush2.bf16.msra.mxu0 0
      %649 = vmatprep.subr.bf16.mxu0 0
      %650 = vmatpush2.bf16.msra.mxu0 0
      %651 = vmatprep.subr.bf16.mxu0 0
      %652 = vmatpush2.bf16.msra.mxu0 0
      %653 = vmatprep.subr.bf16.mxu0 0
      %654 = vmatpush2.bf16.msra.mxu0 0
      %655 = vmatprep.subr.bf16.mxu0 0
      %656 = vmatpush2.bf16.msra.mxu0 0
      %657 = vmatprep.subr.bf16.mxu0 0
      %658 = vmatpush2.bf16.msra.mxu0 0
      %659 = vmatprep.subr.bf16.mxu0 0
      %660 = vmatpush2.bf16.msra.mxu0 0
      %661 = vmatprep.subr.bf16.mxu0 0
      %662 = vmatpush2.bf16.msra.mxu0 0
      %663 = vmatprep.mubr.bf16.mxu0 0
      %664 = vmatmul.mubr.bf16.gmra.mxu0 %v629
      %v665 = vpop.f32.mrf.mxu0
      %v666 = vadd.f32 0.0, %v665
      %v667 = vpop.f32.mrf.mxu0
      %v668 = vpop.f32.mrf.mxu0
      %v669 = vpop.f32.mrf.mxu0
      %670 = vdwg.mxu0
      %v671 = vadd.f32 %v594, %v666
      %v672 = vpack.c.bf16 %v430, %v430
      %v673 = vld [vmem:[%s2 + $0x60] sm:$0xf]
      %v674 = vld [vmem:[%s2 + $0x64] sm:$0xf]
      %v675 = vld [vmem:[%s2 + $0x68] sm:$0xf]
      %v676 = vld [vmem:[%s2 + $0x6c] sm:$0xf]
      %v677 = vld [vmem:[%s2 + $0x70] sm:$0xf]
      %v678 = vld [vmem:[%s2 + $0x74] sm:$0xf]
      %v679 = vld [vmem:[%s2 + $0x78] sm:$0xf]
      %v680 = vld [vmem:[%s2 + $0x7c] sm:$0xf]
      %v689 = vunpack.c.l.b16 %v673
      %v690 = vunpack.c.l.b16 %v674
      %v691 = vunpack.c.l.b16 %v675
      %v692 = vunpack.c.l.b16 %v676
      %v693 = vunpack.c.l.b16 %v677
      %v694 = vunpack.c.l.b16 %v678
      %v695 = vunpack.c.l.b16 %v679
      %v696 = vunpack.c.l.b16 %v680
      %v697 = vpack.c.b16 %v690, %v689
      %v698 = vpack.c.b16 %v692, %v691
      %v699 = vpack.c.b16 %v694, %v693
      %v700 = vpack.c.b16 %v696, %v695
      %v706 = vsel %vm467, %v672, 0
      %708 = vmatprep.subr.bf16.mxu0 0
      %709 = vmatpush1.bf16.msra.mxu0 0
      %710 = vmatprep.subr.bf16.mxu0 0
      %711 = vmatpush1.bf16.msra.mxu0 0
      %712 = vmatprep.subr.bf16.mxu0 0
      %713 = vmatpush1.bf16.msra.mxu0 0
      %714 = vmatprep.subr.bf16.mxu0 0
      %715 = vmatpush1.bf16.msra.mxu0 0
      %716 = vmatprep.subr.bf16.mxu0 0
      %717 = vmatpush1.bf16.msra.mxu0 %v700
      %718 = vmatprep.subr.bf16.mxu0 0
      %719 = vmatpush1.bf16.msra.mxu0 %v699
      %720 = vmatprep.subr.bf16.mxu0 0
      %721 = vmatpush1.bf16.msra.mxu0 %v698
      %722 = vmatprep.subr.bf16.mxu0 0
      %723 = vmatpush1.bf16.msra.mxu0 %v697
      %724 = vmatprep.subr.bf16.mxu0 0
      %725 = vmatpush2.bf16.msra.mxu0 0
      %726 = vmatprep.subr.bf16.mxu0 0
      %727 = vmatpush2.bf16.msra.mxu0 0
      %728 = vmatprep.subr.bf16.mxu0 0
      %729 = vmatpush2.bf16.msra.mxu0 0
      %730 = vmatprep.subr.bf16.mxu0 0
      %731 = vmatpush2.bf16.msra.mxu0 0
      %732 = vmatprep.subr.bf16.mxu0 0
      %733 = vmatpush2.bf16.msra.mxu0 0
      %734 = vmatprep.subr.bf16.mxu0 0
      %735 = vmatpush2.bf16.msra.mxu0 0
      %736 = vmatprep.subr.bf16.mxu0 0
      %737 = vmatpush2.bf16.msra.mxu0 0
      %738 = vmatprep.subr.bf16.mxu0 0
      %739 = vmatpush2.bf16.msra.mxu0 0
      %740 = vmatprep.mubr.bf16.mxu0 0
      %741 = vmatmul.mubr.bf16.gmra.mxu0 %v706
      %v742 = vpop.f32.mrf.mxu0
      %v743 = vadd.f32 0.0, %v742
      %v744 = vpop.f32.mrf.mxu0
      %v745 = vpop.f32.mrf.mxu0
      %v746 = vpop.f32.mrf.mxu0
      %747 = vdwg.mxu0
      %v748 = vadd.f32 %v671, %v743
      %v749 = vmax.f32 %v748, 0.0
      %v750 = vld [vmem:[%s4] sm:$0xf]
      %v751 = vld [vmem:[%s4 + $0x4] sm:$0xf]
      %v752 = vld [vmem:[%s4 + $0x8] sm:$0xf]
      %v753 = vld [vmem:[%s4 + $0xc] sm:$0xf]
      %v754 = vld [vmem:[%s4 + $0x10] sm:$0xf]
      %v755 = vld [vmem:[%s4 + $0x14] sm:$0xf]
      %v756 = vld [vmem:[%s4 + $0x18] sm:$0xf]
      %v757 = vld [vmem:[%s4 + $0x1c] sm:$0xf]
      %v758 = vpack.c.bf16 %v749, %v749
      %v767 = vunpack.c.l.b16 %v750
      %v768 = vunpack.c.l.b16 %v751
      %v769 = vunpack.c.l.b16 %v752
      %v770 = vunpack.c.l.b16 %v753
      %v771 = vunpack.c.l.b16 %v754
      %v772 = vunpack.c.l.b16 %v755
      %v773 = vunpack.c.l.b16 %v756
      %v774 = vunpack.c.l.b16 %v757
      %v775 = vpack.c.b16 %v768, %v767
      %v776 = vpack.c.b16 %v770, %v769
      %v777 = vpack.c.b16 %v772, %v771
      %v778 = vpack.c.b16 %v774, %v773
      %vm779 = vcmask 64512
      %v781 = vsel %vm779, %v775, 0
      %v784 = vsel %vm779, %v776, 0
      %v787 = vsel %vm779, %v777, 0
      %v790 = vsel %vm779, %v778, 0
      %vm792 = vcmask 1043456
      %v794 = vsel %vm792, %v758, 0
      %796 = vmatprep.subr.bf16.mxu0 0
      %797 = vmatpush1.bf16.msra.mxu0 0
      %798 = vmatprep.subr.bf16.mxu0 0
      %799 = vmatpush1.bf16.msra.mxu0 0
      %800 = vmatprep.subr.bf16.mxu0 0
      %801 = vmatpush1.bf16.msra.mxu0 0
      %802 = vmatprep.subr.bf16.mxu0 0
      %803 = vmatpush1.bf16.msra.mxu0 0
      %804 = vmatprep.subr.bf16.mxu0 0
      %805 = vmatpush1.bf16.msra.mxu0 0
      %806 = vmatprep.subr.bf16.mxu0 0
      %807 = vmatpush1.bf16.msra.mxu0 0
      %808 = vmatprep.subr.bf16.mxu0 0
      %809 = vmatpush1.bf16.msra.mxu0 0
      %810 = vmatprep.subr.bf16.mxu0 0
      %811 = vmatpush1.bf16.msra.mxu0 %v794
      %812 = vmatprep.subr.bf16.mxu0 0
      %813 = vmatpush2.bf16.msra.mxu0 0
      %814 = vmatprep.subr.bf16.mxu0 0
      %815 = vmatpush2.bf16.msra.mxu0 0
      %816 = vmatprep.subr.bf16.mxu0 0
      %817 = vmatpush2.bf16.msra.mxu0 0
      %818 = vmatprep.subr.bf16.mxu0 0
      %819 = vmatpush2.bf16.msra.mxu0 0
      %820 = vmatprep.subr.bf16.mxu0 0
      %821 = vmatpush2.bf16.msra.mxu0 0
      %822 = vmatprep.subr.bf16.mxu0 0
      %823 = vmatpush2.bf16.msra.mxu0 0
      %824 = vmatprep.subr.bf16.mxu0 0
      %825 = vmatpush2.bf16.msra.mxu0 0
      %826 = vmatprep.subr.bf16.mxu0 0
      %827 = vmatpush2.bf16.msra.mxu0 0
      %828 = vmatprep.mubr.bf16.mxu0 0
      %829 = vmatmul.mubr.bf16.gmra.mxu0 %v781
      %v830 = vpop.f32.mrf.mxu0
      %v831 = vadd.f32 0.0, %v830
      %v832 = vpop.f32.mrf.mxu0
      %v833 = vpop.f32.mrf.mxu0
      %v834 = vadd.f32 0.0, %v833
      %v835 = vpop.f32.mrf.mxu0
      %836 = vmatprep.mubr.bf16.mxu0 0
      %837 = vmatmul.mubr.bf16.gmra.mxu0 %v784
      %v838 = vpop.f32.mrf.mxu0
      %v839 = vadd.f32 0.0, %v838
      %v840 = vpop.f32.mrf.mxu0
      %v841 = vpop.f32.mrf.mxu0
      %v842 = vadd.f32 0.0, %v841
      %v843 = vpop.f32.mrf.mxu0
      %844 = vmatprep.mubr.bf16.mxu0 0
      %845 = vmatmul.mubr.bf16.gmra.mxu0 %v787
      %v846 = vpop.f32.mrf.mxu0
      %v847 = vadd.f32 0.0, %v846
      %v848 = vpop.f32.mrf.mxu0
      %v849 = vpop.f32.mrf.mxu0
      %v850 = vadd.f32 0.0, %v849
      %v851 = vpop.f32.mrf.mxu0
      %852 = vmatprep.mubr.bf16.mxu0 0
      %853 = vmatmul.mubr.bf16.gmra.mxu0 %v790
      %v854 = vpop.f32.mrf.mxu0
      %v855 = vadd.f32 0.0, %v854
      %v856 = vpop.f32.mrf.mxu0
      %v857 = vpop.f32.mrf.mxu0
      %v858 = vadd.f32 0.0, %v857
      %v859 = vpop.f32.mrf.mxu0
      %860 = vdwg.mxu0
      %v861 = vld [vmem:[%s6] sm:$0x1]
      %v862 = vpack.c.bf16 %v834, %v831
      %v863 = vld [vmem:[%s5] sm:$0xf]
      %v864 = vld [vmem:[%s5 + $0x4] sm:$0xf]
      %v865 = vld [vmem:[%s5 + $0x8] sm:$0xf]
      %v866 = vld [vmem:[%s5 + $0xc] sm:$0xf]
      %v867 = vld [vmem:[%s5 + $0x10] sm:$0xf]
      %v868 = vld [vmem:[%s5 + $0x14] sm:$0xf]
      %v869 = vld [vmem:[%s5 + $0x18] sm:$0xf]
      %v870 = vld [vmem:[%s5 + $0x1c] sm:$0xf]
      %v879 = vunpack.c.l.b16 %v863
      %v880 = vunpack.c.l.b16 %v864
      %v881 = vunpack.c.l.b16 %v865
      %v882 = vunpack.c.l.b16 %v866
      %v883 = vunpack.c.l.b16 %v867
      %v884 = vunpack.c.l.b16 %v868
      %v885 = vunpack.c.l.b16 %v869
      %v886 = vunpack.c.l.b16 %v870
      %v887 = vpack.c.b16 %v880, %v879
      %v888 = vpack.c.b16 %v882, %v881
      %v889 = vpack.c.b16 %v884, %v883
      %v890 = vpack.c.b16 %v886, %v885
      %v896 = vsel %vm467, %v862, 0
      %898 = vmatprep.subr.bf16.mxu0 0
      %899 = vmatpush1.bf16.msra.mxu0 0
      %900 = vmatprep.subr.bf16.mxu0 0
      %901 = vmatpush1.bf16.msra.mxu0 0
      %902 = vmatprep.subr.bf16.mxu0 0
      %903 = vmatpush1.bf16.msra.mxu0 0
      %904 = vmatprep.subr.bf16.mxu0 0
      %905 = vmatpush1.bf16.msra.mxu0 0
      %906 = vmatprep.subr.bf16.mxu0 0
      %907 = vmatpush1.bf16.msra.mxu0 %v890
      %908 = vmatprep.subr.bf16.mxu0 0
      %909 = vmatpush1.bf16.msra.mxu0 %v889
      %910 = vmatprep.subr.bf16.mxu0 0
      %911 = vmatpush1.bf16.msra.mxu0 %v888
      %912 = vmatprep.subr.bf16.mxu0 0
      %913 = vmatpush1.bf16.msra.mxu0 %v887
      %914 = vmatprep.subr.bf16.mxu0 0
      %915 = vmatpush2.bf16.msra.mxu0 0
      %916 = vmatprep.subr.bf16.mxu0 0
      %917 = vmatpush2.bf16.msra.mxu0 0
      %918 = vmatprep.subr.bf16.mxu0 0
      %919 = vmatpush2.bf16.msra.mxu0 0
      %920 = vmatprep.subr.bf16.mxu0 0
      %921 = vmatpush2.bf16.msra.mxu0 0
      %922 = vmatprep.subr.bf16.mxu0 0
      %923 = vmatpush2.bf16.msra.mxu0 0
      %924 = vmatprep.subr.bf16.mxu0 0
      %925 = vmatpush2.bf16.msra.mxu0 0
      %926 = vmatprep.subr.bf16.mxu0 0
      %927 = vmatpush2.bf16.msra.mxu0 0
      %928 = vmatprep.subr.bf16.mxu0 0
      %929 = vmatpush2.bf16.msra.mxu0 0
      %930 = vmatprep.mubr.bf16.mxu0 0
      %931 = vmatmul.mubr.bf16.gmra.mxu0 %v896
      %v932 = vpop.f32.mrf.mxu0
      %v933 = vadd.f32 0.0, %v932
      %v934 = vpop.f32.mrf.mxu0
      %v935 = vpop.f32.mrf.mxu0
      %v936 = vadd.f32 0.0, %v935
      %v937 = vpop.f32.mrf.mxu0
      %938 = vdwg.mxu0
      %v940 = vlaneseq
      %v941 = vshrl.u32 %v940, 7
      %v942 = vsub.s32 0, %v941
      %v943 = vrot.slane %v861, %v942
      %v945 = vadd.f32 %v943, %v933
      %v946 = vadd.f32 %v943, %v936
      %v947 = vpack.c.bf16 %v842, %v839
      %v948 = vld [vmem:[%s5 + $0x20] sm:$0xf]
      %v949 = vld [vmem:[%s5 + $0x24] sm:$0xf]
      %v950 = vld [vmem:[%s5 + $0x28] sm:$0xf]
      %v951 = vld [vmem:[%s5 + $0x2c] sm:$0xf]
      %v952 = vld [vmem:[%s5 + $0x30] sm:$0xf]
      %v953 = vld [vmem:[%s5 + $0x34] sm:$0xf]
      %v954 = vld [vmem:[%s5 + $0x38] sm:$0xf]
      %v955 = vld [vmem:[%s5 + $0x3c] sm:$0xf]
      %v964 = vunpack.c.l.b16 %v948
      %v965 = vunpack.c.l.b16 %v949
      %v966 = vunpack.c.l.b16 %v950
      %v967 = vunpack.c.l.b16 %v951
      %v968 = vunpack.c.l.b16 %v952
      %v969 = vunpack.c.l.b16 %v953
      %v970 = vunpack.c.l.b16 %v954
      %v971 = vunpack.c.l.b16 %v955
      %v972 = vpack.c.b16 %v965, %v964
      %v973 = vpack.c.b16 %v967, %v966
      %v974 = vpack.c.b16 %v969, %v968
      %v975 = vpack.c.b16 %v971, %v970
      %v981 = vsel %vm467, %v947, 0
      %983 = vmatprep.subr.bf16.mxu0 0
      %984 = vmatpush1.bf16.msra.mxu0 0
      %985 = vmatprep.subr.bf16.mxu0 0
      %986 = vmatpush1.bf16.msra.mxu0 0
      %987 = vmatprep.subr.bf16.mxu0 0
      %988 = vmatpush1.bf16.msra.mxu0 0
      %989 = vmatprep.subr.bf16.mxu0 0
      %990 = vmatpush1.bf16.msra.mxu0 0
      %991 = vmatprep.subr.bf16.mxu0 0
      %992 = vmatpush1.bf16.msra.mxu0 %v975
      %993 = vmatprep.subr.bf16.mxu0 0
      %994 = vmatpush1.bf16.msra.mxu0 %v974
      %995 = vmatprep.subr.bf16.mxu0 0
      %996 = vmatpush1.bf16.msra.mxu0 %v973
      %997 = vmatprep.subr.bf16.mxu0 0
      %998 = vmatpush1.bf16.msra.mxu0 %v972
      %999 = vmatprep.subr.bf16.mxu0 0
      %1000 = vmatpush2.bf16.msra.mxu0 0
      %1001 = vmatprep.subr.bf16.mxu0 0
      %1002 = vmatpush2.bf16.msra.mxu0 0
      %1003 = vmatprep.subr.bf16.mxu0 0
      %1004 = vmatpush2.bf16.msra.mxu0 0
      %1005 = vmatprep.subr.bf16.mxu0 0
      %1006 = vmatpush2.bf16.msra.mxu0 0
      %1007 = vmatprep.subr.bf16.mxu0 0
      %1008 = vmatpush2.bf16.msra.mxu0 0
      %1009 = vmatprep.subr.bf16.mxu0 0
      %1010 = vmatpush2.bf16.msra.mxu0 0
      %1011 = vmatprep.subr.bf16.mxu0 0
      %1012 = vmatpush2.bf16.msra.mxu0 0
      %1013 = vmatprep.subr.bf16.mxu0 0
      %1014 = vmatpush2.bf16.msra.mxu0 0
      %1015 = vmatprep.mubr.bf16.mxu0 0
      %1016 = vmatmul.mubr.bf16.gmra.mxu0 %v981
      %v1017 = vpop.f32.mrf.mxu0
      %v1018 = vadd.f32 0.0, %v1017
      %v1019 = vpop.f32.mrf.mxu0
      %v1020 = vpop.f32.mrf.mxu0
      %v1021 = vadd.f32 0.0, %v1020
      %v1022 = vpop.f32.mrf.mxu0
      %1023 = vdwg.mxu0
      %v1024 = vadd.f32 %v945, %v1018
      %v1025 = vadd.f32 %v946, %v1021
      %v1026 = vpack.c.bf16 %v850, %v847
      %v1027 = vld [vmem:[%s5 + $0x40] sm:$0xf]
      %v1028 = vld [vmem:[%s5 + $0x44] sm:$0xf]
      %v1029 = vld [vmem:[%s5 + $0x48] sm:$0xf]
      %v1030 = vld [vmem:[%s5 + $0x4c] sm:$0xf]
      %v1031 = vld [vmem:[%s5 + $0x50] sm:$0xf]
      %v1032 = vld [vmem:[%s5 + $0x54] sm:$0xf]
      %v1033 = vld [vmem:[%s5 + $0x58] sm:$0xf]
      %v1034 = vld [vmem:[%s5 + $0x5c] sm:$0xf]
      %v1043 = vunpack.c.l.b16 %v1027
      %v1044 = vunpack.c.l.b16 %v1028
      %v1045 = vunpack.c.l.b16 %v1029
      %v1046 = vunpack.c.l.b16 %v1030
      %v1047 = vunpack.c.l.b16 %v1031
      %v1048 = vunpack.c.l.b16 %v1032
      %v1049 = vunpack.c.l.b16 %v1033
      %v1050 = vunpack.c.l.b16 %v1034
      %v1051 = vpack.c.b16 %v1044, %v1043
      %v1052 = vpack.c.b16 %v1046, %v1045
      %v1053 = vpack.c.b16 %v1048, %v1047
      %v1054 = vpack.c.b16 %v1050, %v1049
      %v1060 = vsel %vm467, %v1026, 0
      %1062 = vmatprep.subr.bf16.mxu0 0
      %1063 = vmatpush1.bf16.msra.mxu0 0
      %1064 = vmatprep.subr.bf16.mxu0 0
      %1065 = vmatpush1.bf16.msra.mxu0 0
      %1066 = vmatprep.subr.bf16.mxu0 0
      %1067 = vmatpush1.bf16.msra.mxu0 0
      %1068 = vmatprep.subr.bf16.mxu0 0
      %1069 = vmatpush1.bf16.msra.mxu0 0
      %1070 = vmatprep.subr.bf16.mxu0 0
      %1071 = vmatpush1.bf16.msra.mxu0 %v1054
      %1072 = vmatprep.subr.bf16.mxu0 0
      %1073 = vmatpush1.bf16.msra.mxu0 %v1053
      %1074 = vmatprep.subr.bf16.mxu0 0
      %1075 = vmatpush1.bf16.msra.mxu0 %v1052
      %1076 = vmatprep.subr.bf16.mxu0 0
      %1077 = vmatpush1.bf16.msra.mxu0 %v1051
      %1078 = vmatprep.subr.bf16.mxu0 0
      %1079 = vmatpush2.bf16.msra.mxu0 0
      %1080 = vmatprep.subr.bf16.mxu0 0
      %1081 = vmatpush2.bf16.msra.mxu0 0
      %1082 = vmatprep.subr.bf16.mxu0 0
      %1083 = vmatpush2.bf16.msra.mxu0 0
      %1084 = vmatprep.subr.bf16.mxu0 0
      %1085 = vmatpush2.bf16.msra.mxu0 0
      %1086 = vmatprep.subr.bf16.mxu0 0
      %1087 = vmatpush2.bf16.msra.mxu0 0
      %1088 = vmatprep.subr.bf16.mxu0 0
      %1089 = vmatpush2.bf16.msra.mxu0 0
      %1090 = vmatprep.subr.bf16.mxu0 0
      %1091 = vmatpush2.bf16.msra.mxu0 0
      %1092 = vmatprep.subr.bf16.mxu0 0
      %1093 = vmatpush2.bf16.msra.mxu0 0
      %1094 = vmatprep.mubr.bf16.mxu0 0
      %1095 = vmatmul.mubr.bf16.gmra.mxu0 %v1060
      %v1096 = vpop.f32.mrf.mxu0
      %v1097 = vadd.f32 0.0, %v1096
      %v1098 = vpop.f32.mrf.mxu0
      %v1099 = vpop.f32.mrf.mxu0
      %v1100 = vadd.f32 0.0, %v1099
      %v1101 = vpop.f32.mrf.mxu0
      %1102 = vdwg.mxu0
      %v1103 = vadd.f32 %v1024, %v1097
      %v1104 = vadd.f32 %v1025, %v1100
      %v1105 = vpack.c.bf16 %v858, %v855
      %v1106 = vld [vmem:[%s5 + $0x60] sm:$0xf]
      %v1107 = vld [vmem:[%s5 + $0x64] sm:$0xf]
      %v1108 = vld [vmem:[%s5 + $0x68] sm:$0xf]
      %v1109 = vld [vmem:[%s5 + $0x6c] sm:$0xf]
      %v1110 = vld [vmem:[%s5 + $0x70] sm:$0xf]
      %v1111 = vld [vmem:[%s5 + $0x74] sm:$0xf]
      %v1112 = vld [vmem:[%s5 + $0x78] sm:$0xf]
      %v1113 = vld [vmem:[%s5 + $0x7c] sm:$0xf]
      %v1122 = vunpack.c.l.b16 %v1106
      %v1123 = vunpack.c.l.b16 %v1107
      %v1124 = vunpack.c.l.b16 %v1108
      %v1125 = vunpack.c.l.b16 %v1109
      %v1126 = vunpack.c.l.b16 %v1110
      %v1127 = vunpack.c.l.b16 %v1111
      %v1128 = vunpack.c.l.b16 %v1112
      %v1129 = vunpack.c.l.b16 %v1113
      %v1130 = vpack.c.b16 %v1123, %v1122
      %v1131 = vpack.c.b16 %v1125, %v1124
      %v1132 = vpack.c.b16 %v1127, %v1126
      %v1133 = vpack.c.b16 %v1129, %v1128
      %v1139 = vsel %vm467, %v1105, 0
      %1141 = vmatprep.subr.bf16.mxu0 0
      %1142 = vmatpush1.bf16.msra.mxu0 0
      %1143 = vmatprep.subr.bf16.mxu0 0
      %1144 = vmatpush1.bf16.msra.mxu0 0
      %1145 = vmatprep.subr.bf16.mxu0 0
      %1146 = vmatpush1.bf16.msra.mxu0 0
      %1147 = vmatprep.subr.bf16.mxu0 0
      %1148 = vmatpush1.bf16.msra.mxu0 0
      %1149 = vmatprep.subr.bf16.mxu0 0
      %1150 = vmatpush1.bf16.msra.mxu0 %v1133
      %1151 = vmatprep.subr.bf16.mxu0 0
      %1152 = vmatpush1.bf16.msra.mxu0 %v1132
      %1153 = vmatprep.subr.bf16.mxu0 0
      %1154 = vmatpush1.bf16.msra.mxu0 %v1131
      %1155 = vmatprep.subr.bf16.mxu0 0
      %1156 = vmatpush1.bf16.msra.mxu0 %v1130
      %1157 = vmatprep.subr.bf16.mxu0 0
      %1158 = vmatpush2.bf16.msra.mxu0 0
      %1159 = vmatprep.subr.bf16.mxu0 0
      %1160 = vmatpush2.bf16.msra.mxu0 0
      %1161 = vmatprep.subr.bf16.mxu0 0
      %1162 = vmatpush2.bf16.msra.mxu0 0
      %1163 = vmatprep.subr.bf16.mxu0 0
      %1164 = vmatpush2.bf16.msra.mxu0 0
      %1165 = vmatprep.subr.bf16.mxu0 0
      %1166 = vmatpush2.bf16.msra.mxu0 0
      %1167 = vmatprep.subr.bf16.mxu0 0
      %1168 = vmatpush2.bf16.msra.mxu0 0
      %1169 = vmatprep.subr.bf16.mxu0 0
      %1170 = vmatpush2.bf16.msra.mxu0 0
      %1171 = vmatprep.subr.bf16.mxu0 0
      %1172 = vmatpush2.bf16.msra.mxu0 0
      %1173 = vmatprep.mubr.bf16.mxu0 0
      %1174 = vmatmul.mubr.bf16.gmra.mxu0 %v1139
      %v1175 = vpop.f32.mrf.mxu0
      %v1176 = vadd.f32 0.0, %v1175
      %v1177 = vpop.f32.mrf.mxu0
      %v1178 = vpop.f32.mrf.mxu0
      %v1179 = vadd.f32 0.0, %v1178
      %v1180 = vpop.f32.mrf.mxu0
      %1181 = vdwg.mxu0
      %v1182 = vadd.f32 %v1103, %v1176
      %v1183 = vadd.f32 %v1104, %v1179
      %v1184 = vmax.f32 %v1182, 0.0
      %v1185 = vmax.f32 %v1183, 0.0
      %v1186 = vld [vmem:[%s7] sm:$0xf]
      %v1187 = vld [vmem:[%s7 + $0x4] sm:$0xf]
      %v1188 = vld [vmem:[%s7 + $0x8] sm:$0xf]
      %v1189 = vld [vmem:[%s7 + $0xc] sm:$0xf]
      %v1190 = vld [vmem:[%s7 + $0x10] sm:$0xf]
      %v1191 = vld [vmem:[%s7 + $0x14] sm:$0xf]
      %v1192 = vld [vmem:[%s7 + $0x18] sm:$0xf]
      %v1193 = vld [vmem:[%s7 + $0x1c] sm:$0xf]
      %v1194 = vld [vmem:[%s7 + $0x20] sm:$0xf]
      %v1195 = vld [vmem:[%s7 + $0x24] sm:$0xf]
      %v1196 = vld [vmem:[%s7 + $0x28] sm:$0xf]
      %v1197 = vld [vmem:[%s7 + $0x2c] sm:$0xf]
      %v1198 = vld [vmem:[%s7 + $0x30] sm:$0xf]
      %v1199 = vld [vmem:[%s7 + $0x34] sm:$0xf]
      %v1200 = vld [vmem:[%s7 + $0x38] sm:$0xf]
      %v1201 = vld [vmem:[%s7 + $0x3c] sm:$0xf]
      %v1202 = vpack.c.bf16 %v1185, %v1184
      %v1219 = vunpack.c.l.b16 %v1186
      %v1220 = vunpack.c.l.b16 %v1187
      %v1221 = vunpack.c.l.b16 %v1188
      %v1222 = vunpack.c.l.b16 %v1189
      %v1223 = vunpack.c.l.b16 %v1190
      %v1224 = vunpack.c.l.b16 %v1191
      %v1225 = vunpack.c.l.b16 %v1192
      %v1226 = vunpack.c.l.b16 %v1193
      %v1227 = vunpack.c.l.b16 %v1194
      %v1228 = vunpack.c.l.b16 %v1195
      %v1229 = vunpack.c.l.b16 %v1196
      %v1230 = vunpack.c.l.b16 %v1197
      %v1231 = vunpack.c.l.b16 %v1198
      %v1232 = vunpack.c.l.b16 %v1199
      %v1233 = vunpack.c.l.b16 %v1200
      %v1234 = vunpack.c.l.b16 %v1201
      %v1235 = vpack.c.b16 %v1220, %v1219
      %v1236 = vpack.c.b16 %v1222, %v1221
      %v1237 = vpack.c.b16 %v1224, %v1223
      %v1238 = vpack.c.b16 %v1226, %v1225
      %v1239 = vpack.c.b16 %v1228, %v1227
      %v1240 = vpack.c.b16 %v1230, %v1229
      %v1241 = vpack.c.b16 %v1232, %v1231
      %v1242 = vpack.c.b16 %v1234, %v1233
      %vm1243 = vcmask 130048
      %v1245 = vsel %vm1243, %v1235, 0
      %v1248 = vsel %vm1243, %v1236, 0
      %v1251 = vsel %vm1243, %v1237, 0
      %v1254 = vsel %vm1243, %v1238, 0
      %v1257 = vsel %vm1243, %v1239, 0
      %v1260 = vsel %vm1243, %v1240, 0
      %v1263 = vsel %vm1243, %v1241, 0
      %v1266 = vsel %vm1243, %v1242, 0
      %1268 = vmatprep.subr.bf16.mxu0 0
      %1269 = vmatpush1.bf16.msra.mxu0 0
      %1270 = vmatprep.subr.bf16.mxu0 0
      %1271 = vmatpush1.bf16.msra.mxu0 0
      %1272 = vmatprep.subr.bf16.mxu0 0
      %1273 = vmatpush1.bf16.msra.mxu0 0
      %1274 = vmatprep.subr.bf16.mxu0 0
      %1275 = vmatpush1.bf16.msra.mxu0 0
      %1276 = vmatprep.subr.bf16.mxu0 0
      %1277 = vmatpush1.bf16.msra.mxu0 0
      %1278 = vmatprep.subr.bf16.mxu0 0
      %1279 = vmatpush1.bf16.msra.mxu0 0
      %1280 = vmatprep.subr.bf16.mxu0 0
      %1281 = vmatpush1.bf16.msra.mxu0 0
      %1282 = vmatprep.subr.bf16.mxu0 0
      %1283 = vmatpush1.bf16.msra.mxu0 %v1202
      %1284 = vmatprep.subr.bf16.mxu0 0
      %1285 = vmatpush2.bf16.msra.mxu0 0
      %1286 = vmatprep.subr.bf16.mxu0 0
      %1287 = vmatpush2.bf16.msra.mxu0 0
      %1288 = vmatprep.subr.bf16.mxu0 0
      %1289 = vmatpush2.bf16.msra.mxu0 0
      %1290 = vmatprep.subr.bf16.mxu0 0
      %1291 = vmatpush2.bf16.msra.mxu0 0
      %1292 = vmatprep.subr.bf16.mxu0 0
      %1293 = vmatpush2.bf16.msra.mxu0 0
      %1294 = vmatprep.subr.bf16.mxu0 0
      %1295 = vmatpush2.bf16.msra.mxu0 0
      %1296 = vmatprep.subr.bf16.mxu0 0
      %1297 = vmatpush2.bf16.msra.mxu0 0
      %1298 = vmatprep.subr.bf16.mxu0 0
      %1299 = vmatpush2.bf16.msra.mxu0 0
      %1300 = vmatprep.mubr.bf16.mxu0 0
      %1301 = vmatmul.mubr.bf16.gmra.mxu0 %v1245
      %v1302 = vpop.f32.mrf.mxu0
      %v1303 = vadd.f32 0.0, %v1302
      %v1304 = vpop.f32.mrf.mxu0
      %v1305 = vpop.f32.mrf.mxu0
      %v1306 = vadd.f32 0.0, %v1305
      %v1307 = vpop.f32.mrf.mxu0
      %1308 = vmatprep.mubr.bf16.mxu0 0
      %1309 = vmatmul.mubr.bf16.gmra.mxu0 %v1248
      %v1310 = vpop.f32.mrf.mxu0
      %v1311 = vadd.f32 0.0, %v1310
      %v1312 = vpop.f32.mrf.mxu0
      %v1313 = vpop.f32.mrf.mxu0
      %v1314 = vadd.f32 0.0, %v1313
      %v1315 = vpop.f32.mrf.mxu0
      %1316 = vmatprep.mubr.bf16.mxu0 0
      %1317 = vmatmul.mubr.bf16.gmra.mxu0 %v1251
      %v1318 = vpop.f32.mrf.mxu0
      %v1319 = vadd.f32 0.0, %v1318
      %v1320 = vpop.f32.mrf.mxu0
      %v1321 = vpop.f32.mrf.mxu0
      %v1322 = vadd.f32 0.0, %v1321
      %v1323 = vpop.f32.mrf.mxu0
      %1324 = vmatprep.mubr.bf16.mxu0 0
      %1325 = vmatmul.mubr.bf16.gmra.mxu0 %v1254
      %v1326 = vpop.f32.mrf.mxu0
      %v1327 = vadd.f32 0.0, %v1326
      %v1328 = vpop.f32.mrf.mxu0
      %v1329 = vpop.f32.mrf.mxu0
      %v1330 = vadd.f32 0.0, %v1329
      %v1331 = vpop.f32.mrf.mxu0
      %1332 = vmatprep.mubr.bf16.mxu0 0
      %1333 = vmatmul.mubr.bf16.gmra.mxu0 %v1257
      %v1334 = vpop.f32.mrf.mxu0
      %v1335 = vadd.f32 0.0, %v1334
      %v1336 = vpop.f32.mrf.mxu0
      %v1337 = vpop.f32.mrf.mxu0
      %v1338 = vadd.f32 0.0, %v1337
      %v1339 = vpop.f32.mrf.mxu0
      %1340 = vmatprep.mubr.bf16.mxu0 0
      %1341 = vmatmul.mubr.bf16.gmra.mxu0 %v1260
      %v1342 = vpop.f32.mrf.mxu0
      %v1343 = vadd.f32 0.0, %v1342
      %v1344 = vpop.f32.mrf.mxu0
      %v1345 = vpop.f32.mrf.mxu0
      %v1346 = vadd.f32 0.0, %v1345
      %v1347 = vpop.f32.mrf.mxu0
      %1348 = vmatprep.mubr.bf16.mxu0 0
      %1349 = vmatmul.mubr.bf16.gmra.mxu0 %v1263
      %v1350 = vpop.f32.mrf.mxu0
      %v1351 = vadd.f32 0.0, %v1350
      %v1352 = vpop.f32.mrf.mxu0
      %v1353 = vpop.f32.mrf.mxu0
      %v1354 = vadd.f32 0.0, %v1353
      %v1355 = vpop.f32.mrf.mxu0
      %1356 = vmatprep.mubr.bf16.mxu0 0
      %1357 = vmatmul.mubr.bf16.gmra.mxu0 %v1266
      %v1358 = vpop.f32.mrf.mxu0
      %v1359 = vadd.f32 0.0, %v1358
      %v1360 = vpop.f32.mrf.mxu0
      %v1361 = vpop.f32.mrf.mxu0
      %v1362 = vadd.f32 0.0, %v1361
      %v1363 = vpop.f32.mrf.mxu0
      %1364 = vdwg.mxu0
      %v1365 = vld [vmem:[%s9] sm:$0x1]
      %v1366 = vpack.c.bf16 %v1306, %v1303
      %v1367 = vpack.c.bf16 %v1314, %v1311
      %v1368 = vld [vmem:[%s8] sm:$0xf]
      %v1369 = vld [vmem:[%s8 + $0x4] sm:$0xf]
      %v1370 = vld [vmem:[%s8 + $0x8] sm:$0xf]
      %v1371 = vld [vmem:[%s8 + $0xc] sm:$0xf]
      %v1372 = vld [vmem:[%s8 + $0x10] sm:$0xf]
      %v1373 = vld [vmem:[%s8 + $0x14] sm:$0xf]
      %v1374 = vld [vmem:[%s8 + $0x18] sm:$0xf]
      %v1375 = vld [vmem:[%s8 + $0x1c] sm:$0xf]
      %v1384 = vunpack.c.l.b16 %v1368
      %v1385 = vunpack.c.l.b16 %v1369
      %v1386 = vunpack.c.l.b16 %v1370
      %v1387 = vunpack.c.l.b16 %v1371
      %v1388 = vunpack.c.l.b16 %v1372
      %v1389 = vunpack.c.l.b16 %v1373
      %v1390 = vunpack.c.l.b16 %v1374
      %v1391 = vunpack.c.l.b16 %v1375
      %v1392 = vpack.c.b16 %v1385, %v1384
      %v1393 = vpack.c.b16 %v1387, %v1386
      %v1394 = vpack.c.b16 %v1389, %v1388
      %v1395 = vpack.c.b16 %v1391, %v1390
      %v1401 = vsel %vm467, %v1366, 0
      %v1404 = vsel %vm467, %v1367, 0
      %1406 = vmatprep.subr.bf16.mxu0 0
      %1407 = vmatpush1.bf16.msra.mxu0 0
      %1408 = vmatprep.subr.bf16.mxu0 0
      %1409 = vmatpush1.bf16.msra.mxu0 0
      %1410 = vmatprep.subr.bf16.mxu0 0
      %1411 = vmatpush1.bf16.msra.mxu0 0
      %1412 = vmatprep.subr.bf16.mxu0 0
      %1413 = vmatpush1.bf16.msra.mxu0 0
      %1414 = vmatprep.subr.bf16.mxu0 0
      %1415 = vmatpush1.bf16.msra.mxu0 %v1395
      %1416 = vmatprep.subr.bf16.mxu0 0
      %1417 = vmatpush1.bf16.msra.mxu0 %v1394
      %1418 = vmatprep.subr.bf16.mxu0 0
      %1419 = vmatpush1.bf16.msra.mxu0 %v1393
      %1420 = vmatprep.subr.bf16.mxu0 0
      %1421 = vmatpush1.bf16.msra.mxu0 %v1392
      %1422 = vmatprep.subr.bf16.mxu0 0
      %1423 = vmatpush2.bf16.msra.mxu0 0
      %1424 = vmatprep.subr.bf16.mxu0 0
      %1425 = vmatpush2.bf16.msra.mxu0 0
      %1426 = vmatprep.subr.bf16.mxu0 0
      %1427 = vmatpush2.bf16.msra.mxu0 0
      %1428 = vmatprep.subr.bf16.mxu0 0
      %1429 = vmatpush2.bf16.msra.mxu0 0
      %1430 = vmatprep.subr.bf16.mxu0 0
      %1431 = vmatpush2.bf16.msra.mxu0 0
      %1432 = vmatprep.subr.bf16.mxu0 0
      %1433 = vmatpush2.bf16.msra.mxu0 0
      %1434 = vmatprep.subr.bf16.mxu0 0
      %1435 = vmatpush2.bf16.msra.mxu0 0
      %1436 = vmatprep.subr.bf16.mxu0 0
      %1437 = vmatpush2.bf16.msra.mxu0 0
      %1438 = vmatprep.mubr.bf16.mxu0 0
      %1439 = vmatmul.mubr.bf16.gmra.mxu0 %v1401
      %v1440 = vpop.f32.mrf.mxu0
      %v1441 = vadd.f32 0.0, %v1440
      %v1442 = vpop.f32.mrf.mxu0
      %v1443 = vpop.f32.mrf.mxu0
      %v1444 = vadd.f32 0.0, %v1443
      %v1445 = vpop.f32.mrf.mxu0
      %1446 = vmatprep.mubr.bf16.mxu0 0
      %1447 = vmatmul.mubr.bf16.gmra.mxu0 %v1404
      %v1448 = vpop.f32.mrf.mxu0
      %v1449 = vadd.f32 0.0, %v1448
      %v1450 = vpop.f32.mrf.mxu0
      %v1451 = vpop.f32.mrf.mxu0
      %v1452 = vadd.f32 0.0, %v1451
      %v1453 = vpop.f32.mrf.mxu0
      %1454 = vdwg.mxu0
      %v1456 = vlaneseq
      %v1457 = vshrl.u32 %v1456, 7
      %v1458 = vsub.s32 0, %v1457
      %v1459 = vrot.slane %v1365, %v1458
      %v1461 = vadd.f32 %v1459, %v1441
      %v1462 = vadd.f32 %v1459, %v1444
      %v1463 = vadd.f32 %v1459, %v1449
      %v1464 = vadd.f32 %v1459, %v1452
      %v1465 = vpack.c.bf16 %v1322, %v1319
      %v1466 = vpack.c.bf16 %v1330, %v1327
      %v1467 = vld [vmem:[%s8 + $0x20] sm:$0xf]
      %v1468 = vld [vmem:[%s8 + $0x24] sm:$0xf]
      %v1469 = vld [vmem:[%s8 + $0x28] sm:$0xf]
      %v1470 = vld [vmem:[%s8 + $0x2c] sm:$0xf]
      %v1471 = vld [vmem:[%s8 + $0x30] sm:$0xf]
      %v1472 = vld [vmem:[%s8 + $0x34] sm:$0xf]
      %v1473 = vld [vmem:[%s8 + $0x38] sm:$0xf]
      %v1474 = vld [vmem:[%s8 + $0x3c] sm:$0xf]
      %v1483 = vunpack.c.l.b16 %v1467
      %v1484 = vunpack.c.l.b16 %v1468
      %v1485 = vunpack.c.l.b16 %v1469
      %v1486 = vunpack.c.l.b16 %v1470
      %v1487 = vunpack.c.l.b16 %v1471
      %v1488 = vunpack.c.l.b16 %v1472
      %v1489 = vunpack.c.l.b16 %v1473
      %v1490 = vunpack.c.l.b16 %v1474
      %v1491 = vpack.c.b16 %v1484, %v1483
      %v1492 = vpack.c.b16 %v1486, %v1485
      %v1493 = vpack.c.b16 %v1488, %v1487
      %v1494 = vpack.c.b16 %v1490, %v1489
      %v1500 = vsel %vm467, %v1465, 0
      %v1503 = vsel %vm467, %v1466, 0
      %1505 = vmatprep.subr.bf16.mxu0 0
      %1506 = vmatpush1.bf16.msra.mxu0 0
      %1507 = vmatprep.subr.bf16.mxu0 0
      %1508 = vmatpush1.bf16.msra.mxu0 0
      %1509 = vmatprep.subr.bf16.mxu0 0
      %1510 = vmatpush1.bf16.msra.mxu0 0
      %1511 = vmatprep.subr.bf16.mxu0 0
      %1512 = vmatpush1.bf16.msra.mxu0 0
      %1513 = vmatprep.subr.bf16.mxu0 0
      %1514 = vmatpush1.bf16.msra.mxu0 %v1494
      %1515 = vmatprep.subr.bf16.mxu0 0
      %1516 = vmatpush1.bf16.msra.mxu0 %v1493
      %1517 = vmatprep.subr.bf16.mxu0 0
      %1518 = vmatpush1.bf16.msra.mxu0 %v1492
      %1519 = vmatprep.subr.bf16.mxu0 0
      %1520 = vmatpush1.bf16.msra.mxu0 %v1491
      %1521 = vmatprep.subr.bf16.mxu0 0
      %1522 = vmatpush2.bf16.msra.mxu0 0
      %1523 = vmatprep.subr.bf16.mxu0 0
      %1524 = vmatpush2.bf16.msra.mxu0 0
      %1525 = vmatprep.subr.bf16.mxu0 0
      %1526 = vmatpush2.bf16.msra.mxu0 0
      %1527 = vmatprep.subr.bf16.mxu0 0
      %1528 = vmatpush2.bf16.msra.mxu0 0
      %1529 = vmatprep.subr.bf16.mxu0 0
      %1530 = vmatpush2.bf16.msra.mxu0 0
      %1531 = vmatprep.subr.bf16.mxu0 0
      %1532 = vmatpush2.bf16.msra.mxu0 0
      %1533 = vmatprep.subr.bf16.mxu0 0
      %1534 = vmatpush2.bf16.msra.mxu0 0
      %1535 = vmatprep.subr.bf16.mxu0 0
      %1536 = vmatpush2.bf16.msra.mxu0 0
      %1537 = vmatprep.mubr.bf16.mxu0 0
      %1538 = vmatmul.mubr.bf16.gmra.mxu0 %v1500
      %v1539 = vpop.f32.mrf.mxu0
      %v1540 = vadd.f32 0.0, %v1539
      %v1541 = vpop.f32.mrf.mxu0
      %v1542 = vpop.f32.mrf.mxu0
      %v1543 = vadd.f32 0.0, %v1542
      %v1544 = vpop.f32.mrf.mxu0
      %1545 = vmatprep.mubr.bf16.mxu0 0
      %1546 = vmatmul.mubr.bf16.gmra.mxu0 %v1503
      %v1547 = vpop.f32.mrf.mxu0
      %v1548 = vadd.f32 0.0, %v1547
      %v1549 = vpop.f32.mrf.mxu0
      %v1550 = vpop.f32.mrf.mxu0
      %v1551 = vadd.f32 0.0, %v1550
      %v1552 = vpop.f32.mrf.mxu0
      %1553 = vdwg.mxu0
      %v1554 = vadd.f32 %v1461, %v1540
      %v1555 = vadd.f32 %v1462, %v1543
      %v1556 = vadd.f32 %v1463, %v1548
      %v1557 = vadd.f32 %v1464, %v1551
      %v1558 = vpack.c.bf16 %v1338, %v1335
      %v1559 = vpack.c.bf16 %v1346, %v1343
      %v1560 = vld [vmem:[%s8 + $0x40] sm:$0xf]
      %v1561 = vld [vmem:[%s8 + $0x44] sm:$0xf]
      %v1562 = vld [vmem:[%s8 + $0x48] sm:$0xf]
      %v1563 = vld [vmem:[%s8 + $0x4c] sm:$0xf]
      %v1564 = vld [vmem:[%s8 + $0x50] sm:$0xf]
      %v1565 = vld [vmem:[%s8 + $0x54] sm:$0xf]
      %v1566 = vld [vmem:[%s8 + $0x58] sm:$0xf]
      %v1567 = vld [vmem:[%s8 + $0x5c] sm:$0xf]
      %v1576 = vunpack.c.l.b16 %v1560
      %v1577 = vunpack.c.l.b16 %v1561
      %v1578 = vunpack.c.l.b16 %v1562
      %v1579 = vunpack.c.l.b16 %v1563
      %v1580 = vunpack.c.l.b16 %v1564
      %v1581 = vunpack.c.l.b16 %v1565
      %v1582 = vunpack.c.l.b16 %v1566
      %v1583 = vunpack.c.l.b16 %v1567
      %v1584 = vpack.c.b16 %v1577, %v1576
      %v1585 = vpack.c.b16 %v1579, %v1578
      %v1586 = vpack.c.b16 %v1581, %v1580
      %v1587 = vpack.c.b16 %v1583, %v1582
      %v1593 = vsel %vm467, %v1558, 0
      %v1596 = vsel %vm467, %v1559, 0
      %1598 = vmatprep.subr.bf16.mxu0 0
      %1599 = vmatpush1.bf16.msra.mxu0 0
      %1600 = vmatprep.subr.bf16.mxu0 0
      %1601 = vmatpush1.bf16.msra.mxu0 0
      %1602 = vmatprep.subr.bf16.mxu0 0
      %1603 = vmatpush1.bf16.msra.mxu0 0
      %1604 = vmatprep.subr.bf16.mxu0 0
      %1605 = vmatpush1.bf16.msra.mxu0 0
      %1606 = vmatprep.subr.bf16.mxu0 0
      %1607 = vmatpush1.bf16.msra.mxu0 %v1587
      %1608 = vmatprep.subr.bf16.mxu0 0
      %1609 = vmatpush1.bf16.msra.mxu0 %v1586
      %1610 = vmatprep.subr.bf16.mxu0 0
      %1611 = vmatpush1.bf16.msra.mxu0 %v1585
      %1612 = vmatprep.subr.bf16.mxu0 0
      %1613 = vmatpush1.bf16.msra.mxu0 %v1584
      %1614 = vmatprep.subr.bf16.mxu0 0
      %1615 = vmatpush2.bf16.msra.mxu0 0
      %1616 = vmatprep.subr.bf16.mxu0 0
      %1617 = vmatpush2.bf16.msra.mxu0 0
      %1618 = vmatprep.subr.bf16.mxu0 0
      %1619 = vmatpush2.bf16.msra.mxu0 0
      %1620 = vmatprep.subr.bf16.mxu0 0
      %1621 = vmatpush2.bf16.msra.mxu0 0
      %1622 = vmatprep.subr.bf16.mxu0 0
      %1623 = vmatpush2.bf16.msra.mxu0 0
      %1624 = vmatprep.subr.bf16.mxu0 0
      %1625 = vmatpush2.bf16.msra.mxu0 0
      %1626 = vmatprep.subr.bf16.mxu0 0
      %1627 = vmatpush2.bf16.msra.mxu0 0
      %1628 = vmatprep.subr.bf16.mxu0 0
      %1629 = vmatpush2.bf16.msra.mxu0 0
      %1630 = vmatprep.mubr.bf16.mxu0 0
      %1631 = vmatmul.mubr.bf16.gmra.mxu0 %v1593
      %v1632 = vpop.f32.mrf.mxu0
      %v1633 = vadd.f32 0.0, %v1632
      %v1634 = vpop.f32.mrf.mxu0
      %v1635 = vpop.f32.mrf.mxu0
      %v1636 = vadd.f32 0.0, %v1635
      %v1637 = vpop.f32.mrf.mxu0
      %1638 = vmatprep.mubr.bf16.mxu0 0
      %1639 = vmatmul.mubr.bf16.gmra.mxu0 %v1596
      %v1640 = vpop.f32.mrf.mxu0
      %v1641 = vadd.f32 0.0, %v1640
      %v1642 = vpop.f32.mrf.mxu0
      %v1643 = vpop.f32.mrf.mxu0
      %v1644 = vadd.f32 0.0, %v1643
      %v1645 = vpop.f32.mrf.mxu0
      %1646 = vdwg.mxu0
      %v1647 = vadd.f32 %v1554, %v1633
      %v1648 = vadd.f32 %v1555, %v1636
      %v1649 = vadd.f32 %v1556, %v1641
      %v1650 = vadd.f32 %v1557, %v1644
      %v1651 = vpack.c.bf16 %v1354, %v1351
      %v1652 = vpack.c.bf16 %v1362, %v1359
      %v1653 = vld [vmem:[%s8 + $0x60] sm:$0xf]
      %v1654 = vld [vmem:[%s8 + $0x64] sm:$0xf]
      %v1655 = vld [vmem:[%s8 + $0x68] sm:$0xf]
      %v1656 = vld [vmem:[%s8 + $0x6c] sm:$0xf]
      %v1657 = vld [vmem:[%s8 + $0x70] sm:$0xf]
      %v1658 = vld [vmem:[%s8 + $0x74] sm:$0xf]
      %v1659 = vld [vmem:[%s8 + $0x78] sm:$0xf]
      %v1660 = vld [vmem:[%s8 + $0x7c] sm:$0xf]
      %v1669 = vunpack.c.l.b16 %v1653
      %v1670 = vunpack.c.l.b16 %v1654
      %v1671 = vunpack.c.l.b16 %v1655
      %v1672 = vunpack.c.l.b16 %v1656
      %v1673 = vunpack.c.l.b16 %v1657
      %v1674 = vunpack.c.l.b16 %v1658
      %v1675 = vunpack.c.l.b16 %v1659
      %v1676 = vunpack.c.l.b16 %v1660
      %v1677 = vpack.c.b16 %v1670, %v1669
      %v1678 = vpack.c.b16 %v1672, %v1671
      %v1679 = vpack.c.b16 %v1674, %v1673
      %v1680 = vpack.c.b16 %v1676, %v1675
      %v1686 = vsel %vm467, %v1651, 0
      %v1689 = vsel %vm467, %v1652, 0
      %1691 = vmatprep.subr.bf16.mxu0 0
      %1692 = vmatpush1.bf16.msra.mxu0 0
      %1693 = vmatprep.subr.bf16.mxu0 0
      %1694 = vmatpush1.bf16.msra.mxu0 0
      %1695 = vmatprep.subr.bf16.mxu0 0
      %1696 = vmatpush1.bf16.msra.mxu0 0
      %1697 = vmatprep.subr.bf16.mxu0 0
      %1698 = vmatpush1.bf16.msra.mxu0 0
      %1699 = vmatprep.subr.bf16.mxu0 0
      %1700 = vmatpush1.bf16.msra.mxu0 %v1680
      %1701 = vmatprep.subr.bf16.mxu0 0
      %1702 = vmatpush1.bf16.msra.mxu0 %v1679
      %1703 = vmatprep.subr.bf16.mxu0 0
      %1704 = vmatpush1.bf16.msra.mxu0 %v1678
      %1705 = vmatprep.subr.bf16.mxu0 0
      %1706 = vmatpush1.bf16.msra.mxu0 %v1677
      %1707 = vmatprep.subr.bf16.mxu0 0
      %1708 = vmatpush2.bf16.msra.mxu0 0
      %1709 = vmatprep.subr.bf16.mxu0 0
      %1710 = vmatpush2.bf16.msra.mxu0 0
      %1711 = vmatprep.subr.bf16.mxu0 0
      %1712 = vmatpush2.bf16.msra.mxu0 0
      %1713 = vmatprep.subr.bf16.mxu0 0
      %1714 = vmatpush2.bf16.msra.mxu0 0
      %1715 = vmatprep.subr.bf16.mxu0 0
      %1716 = vmatpush2.bf16.msra.mxu0 0
      %1717 = vmatprep.subr.bf16.mxu0 0
      %1718 = vmatpush2.bf16.msra.mxu0 0
      %1719 = vmatprep.subr.bf16.mxu0 0
      %1720 = vmatpush2.bf16.msra.mxu0 0
      %1721 = vmatprep.subr.bf16.mxu0 0
      %1722 = vmatpush2.bf16.msra.mxu0 0
      %1723 = vmatprep.mubr.bf16.mxu0 0
      %1724 = vmatmul.mubr.bf16.gmra.mxu0 %v1686
      %v1725 = vpop.f32.mrf.mxu0
      %v1726 = vadd.f32 0.0, %v1725
      %v1727 = vpop.f32.mrf.mxu0
      %v1728 = vpop.f32.mrf.mxu0
      %v1729 = vadd.f32 0.0, %v1728
      %v1730 = vpop.f32.mrf.mxu0
      %1731 = vmatprep.mubr.bf16.mxu0 0
      %1732 = vmatmul.mubr.bf16.gmra.mxu0 %v1689
      %v1733 = vpop.f32.mrf.mxu0
      %v1734 = vadd.f32 0.0, %v1733
      %v1735 = vpop.f32.mrf.mxu0
      %v1736 = vpop.f32.mrf.mxu0
      %v1737 = vadd.f32 0.0, %v1736
      %v1738 = vpop.f32.mrf.mxu0
      %1739 = vdwg.mxu0
      %v1740 = vadd.f32 %v1647, %v1726
      %v1741 = vadd.f32 %v1648, %v1729
      %v1742 = vadd.f32 %v1649, %v1734
      %v1743 = vadd.f32 %v1650, %v1737
      %1744 = vst [vmem:[%s356] sm:$0xff] %v1740
      %1745 = vst [vmem:[%s356 + $0x8] sm:$0xff] %v1741
      %1746 = vst [vmem:[%s356 + $0x10] sm:$0xff] %v1742
      %1747 = vst [vmem:[%s356 + $0x18] sm:$0xff] %v1743
      %p1748 = scmp.lt.s32.totalorder %s21, 1
      %s1749 = scalar_select %p1748, %s21, 1
      %s1750 = smul.addr %s1749, 4
      %s1751 = smul.addr %s1750, 8
      %s1752 = scalar_lea.vmem %s10, %s1751
      // Predicated region
      $region61: #{decoder_forward.1} parent=59 // pred_check
        %p1753 = pneg %p254
      $region62: #{decoder_forward.1} parent=59 // pred_check_branch
        %1755 = sbr.rel (%p1753) target = $region64
      $region63: #{decoder_forward.1} parent=59 // pred_region
        _
      $region64: #{decoder_forward.1} parent=59 // pred_fallthru
        _
    $region60: #{decoder_forward.1} parent=5 // pred_fallthru
      _
    %p1756 = scmp.le.s32.totalorder 2, %s16
    // Predicated region
    $region65: #{decoder_forward.1} parent=5 // pred_check
      %p1757 = pneg %p1756
    $region66: #{decoder_forward.1} parent=5 // pred_check_branch
      %1759 = sbr.rel (%p1757) target = $region68
    $region67: #{decoder_forward.1} parent=5 // pred_region
      %s1760 = ssub.s32 %s16, 2
      // Predicated region
      $region69: #{decoder_forward.1} parent=67 // pred_check
        %p1761 = pneg %p260
      $region70: #{decoder_forward.1} parent=67 // pred_check_branch
        %1763 = sbr.rel (%p1761) target = $region72
      $region71: #{decoder_forward.1} parent=67 // pred_region
        %p1764 = scmp.lt.s32.totalorder %s22, 1
        %s1765 = scalar_select %p1764, %s22, 1
        %s1766 = smul.addr %s1765, 4
        %s1767 = smul.addr %s1766, 8
        %s1768 = scalar_lea.vmem %s10, %s1767
      $region72: #{decoder_forward.1} parent=67 // pred_fallthru
        _
    $region68: #{decoder_forward.1} parent=5 // pred_fallthru
      _
  $region6: #{decoder_forward.1} parent=0 // loop_footer
    %s20 = sadd.s32 1, %s16
  $region7: #{decoder_forward.1} parent=0 // loop_footer_branch
    %15 = sbr.rel target = $region3
  $region8: #{decoder_forward.1} parent=0 // loop_exit
    _

</llo_original>
